<compile_context>
chip_gen: v7x
topology: tpu7x:2x2x1
jax: 0.10.0
libtpu: 0.0.40
codegen_flags: <defaults>
</compile_context>

<pallas_src>
import numpy as np
import jax
import jax.numpy as jnp
from jax.experimental import pallas as pl
from jax.experimental.pallas import tpu as pltpu

# ----- model hyper-parameters (small, consistent with the module) ------------
N_NODES = 8
IN_FEATURES = 16
HIDDEN_FEATURES = 32    # attention1 out (concat over heads)
OUT_FEATURES = 32       # attention2 / feed-forward out
N_HEADS = 4
NEG_SLOPE = 0.2         # LeakyReLU negative slope
H1 = HIDDEN_FEATURES // N_HEADS          # per-head hidden of layer 1
HN = N_HEADS * N_NODES                   # 32 = heads-in-lanes width
IN_LANES = IN_FEATURES + HN              # 48 = per-graph input-slab lane width

# ----- packed-parameter row layout (lane width 32, offsets multiples of 8) ---
P_LANES = 32
R_W1T  = 0     # (IN_LANES, HIDDEN)  rows   0:48  (rows 16:48 are zero padding)
R_A1   = 48    # (HIDDEN, 2H)        rows  48:80, cols 0:8
R_W2T  = 80    # (HIDDEN, OUT)       rows  80:112
R_A2   = 112   # (OUT, 2)            rows 112:144, cols 0:2
R_FW1T = 144   # (OUT, HIDDEN)       rows 144:176
R_FB1  = 176   # (1, HIDDEN)         row  176
R_FW2T = 184   # (HIDDEN, OUT)       rows 184:216
R_FB2  = 216   # (1, OUT)            row  216
R_SRC1 = 224   # (H, H*N) block-diag ones        rows 224:228
R_SUM1 = 232   # (H*N, H) block-diag ones        rows 232:264, cols 0:4
R_BLKM = 264   # (H*N, HIDDEN) block-diag mask   rows 264:296
R_DIAG = 296   # (N, H*N) per-segment identity   rows 296:304
P_ROWS = 304


def _leaky_relu(x):
    return jnp.where(x >= 0, x, NEG_SLOPE * x)


def gat_kernel(in_ref, p_ref, out_ref):
    slab = in_ref[0]                                   # (N, 48): x | tiled fill-mask
    fillb = slab[:, IN_FEATURES:] != 0.0               # (N, 32) True where adj == 0

    # Static views into the resident packed parameter buffer.
    w1t48    = p_ref[R_W1T:R_W1T + IN_LANES, :]                  # (48, 32), rows 16:48 zero
    a1pk     = p_ref[R_A1:R_A1 + HIDDEN_FEATURES, 0:2 * N_HEADS] # (32, 8)  src 0:4 | dst 4:8
    w2t      = p_ref[R_W2T:R_W2T + HIDDEN_FEATURES, :]           # (32, 32)
    a2pk     = p_ref[R_A2:R_A2 + OUT_FEATURES, 0:2]              # (32, 2)
    fw1t     = p_ref[R_FW1T:R_FW1T + OUT_FEATURES, :]            # (32, 32)
    fb1      = p_ref[R_FB1:R_FB1 + 1, :]                         # (1, 32)
    fw2t     = p_ref[R_FW2T:R_FW2T + HIDDEN_FEATURES, :]         # (32, 32)
    fb2      = p_ref[R_FB2:R_FB2 + 1, :]                         # (1, 32)
    src_ones = p_ref[R_SRC1:R_SRC1 + N_HEADS, :]                 # (4, 32)
    sum_ones = p_ref[R_SUM1:R_SUM1 + HN, 0:N_HEADS]              # (32, 4)
    blk_mask = p_ref[R_BLKM:R_BLKM + HN, :]                      # (32, 32)
    diag_m   = p_ref[R_DIAG:R_DIAG + N_NODES, :]                 # (8, 32)

    # ------------------ attention layer 1: multi-head, concat ----------------
    # (mask lanes of the slab hit zero weight rows, so no lane slice of x needed)
    g = jnp.dot(slab, w1t48, preferred_element_type=jnp.float32)     # (N, H*h1)
    sc = jnp.dot(g, a1pk, preferred_element_type=jnp.float32)        # (N, 2H)
    s_src = sc[:, 0:N_HEADS]                                         # (N, H)
    s_dst = sc[:, N_HEADS:2 * N_HEADS]                               # (N, H)

    # heads-in-lanes (N, H*N): lane h*N + j belongs to head h, neighbour j
    e_src = jnp.dot(s_src, src_ones, preferred_element_type=jnp.float32)   # (N, 32)
    dst_full = jnp.dot(s_dst, src_ones, preferred_element_type=jnp.float32)  # [j, h*N+j'] = s_dst[j,h]
    dst_row = jnp.sum(dst_full * diag_m, axis=0, keepdims=True)             # (1, 32): [h*N+j] = s_dst[j,h]

    e = _leaky_relu(e_src + dst_row)                                 # e[i, h*N+j]
    # masked_fill(adj == 0, 1): filled entries DO take part in the softmax (torch semantics)
    e = jnp.where(fillb, 1.0, e)
    # ONE shared row-max over all 32 lanes: a per-row constant shift, so each head's
    # softmax is unchanged.
    e = e - jnp.max(e, axis=1, keepdims=True)
    p = jnp.exp(e)
    ssum = jnp.dot(p, sum_ones, preferred_element_type=jnp.float32)  # (N, H) per-head sums
    inv = pl.reciprocal(ssum, approx=True)
    inv_b = jnp.dot(inv, src_ones, preferred_element_type=jnp.float32)   # (N, 32)
    attn = p * inv_b                                                  # dropout -> identity (eval)

    # Fused per-head aggregation: one matmul against the block-diagonal g (constant mask).
    g_blk = jnp.concatenate([g] * N_HEADS, axis=0) * blk_mask        # (H*N, H*h1)
    x1 = jnp.dot(attn, g_blk, preferred_element_type=jnp.float32)    # (N, H*h1)

    # ------------------ attention layer 2: single head, mean ------------------
    g2 = jnp.dot(x1, w2t, preferred_element_type=jnp.float32)        # (N, OUT)
    sc2 = jnp.dot(g2, a2pk, preferred_element_type=jnp.float32)      # (N, 2)
    e2 = _leaky_relu(sc2[:, 0:1] + sc2[:, 1:2].T)                    # (N, N)
    e2 = jnp.where(fillb[:, 0:N_NODES], 1.0, e2)
    e2 = e2 - jnp.max(e2, axis=1, keepdims=True)
    p2 = jnp.exp(e2)
    attn2 = p2 * pl.reciprocal(jnp.sum(p2, axis=1, keepdims=True), approx=True)
    x2 = jnp.dot(attn2, g2, preferred_element_type=jnp.float32)      # mean over 1 head == itself

    # ------------------ feed-forward (dropouts = identity) --------------------
    hmid = jnp.maximum(
        jnp.dot(x2, fw1t, preferred_element_type=jnp.float32) + fb1, 0.0)
    y = jnp.dot(hmid, fw2t, preferred_element_type=jnp.float32) + fb2

    # ------------------ softmax over nodes (dim=0), exact normalization -------
    y = y - jnp.max(y, axis=0, keepdims=True)
    py = jnp.exp(y)
    out_ref[0] = py / jnp.sum(py, axis=0, keepdims=True)


# --------------------------- host-side packing --------------------------------
def pack_params(p):
    """Pre-transpose weights, build block-diag score/broadcast constants, and pack
    everything into a single (P_ROWS, 32) f32 lane-aligned, VMEM-resident buffer."""
    a1 = np.asarray(p["a1"], np.float32)                       # (2, h1)
    A1 = np.zeros((HIDDEN_FEATURES, 2 * N_HEADS), np.float32)
    for h in range(N_HEADS):
        A1[h * H1:(h + 1) * H1, h] = a1[0]                     # src scores
        A1[h * H1:(h + 1) * H1, N_HEADS + h] = a1[1]           # dst scores

    src_ones = np.zeros((N_HEADS, HN), np.float32)
    blk_mask = np.zeros((HN, HIDDEN_FEATURES), np.float32)
    diag_m = np.zeros((N_NODES, HN), np.float32)
    for h in range(N_HEADS):
        src_ones[h, h * N_NODES:(h + 1) * N_NODES] = 1.0
        blk_mask[h * N_NODES:(h + 1) * N_NODES, h * H1:(h + 1) * H1] = 1.0
        diag_m[:, h * N_NODES:(h + 1) * N_NODES] = np.eye(N_NODES, dtype=np.float32)
    sum_ones = src_ones.T

    buf = np.zeros((P_ROWS, P_LANES), np.float32)
    buf[R_W1T:R_W1T + IN_FEATURES, :] = np.asarray(p["w1"], np.float32).T  # rows 16:48 stay 0
    buf[R_A1:R_A1 + HIDDEN_FEATURES, 0:2 * N_HEADS] = A1
    buf[R_W2T:R_W2T + HIDDEN_FEATURES, :] = np.asarray(p["w2"], np.float32).T
    buf[R_A2:R_A2 + OUT_FEATURES, 0:2] = np.asarray(p["a2"], np.float32).T
    buf[R_FW1T:R_FW1T + OUT_FEATURES, :] = np.asarray(p["fw1"], np.float32).T
    buf[R_FB1, :] = np.asarray(p["fb1"], np.float32)[0]
    buf[R_FW2T:R_FW2T + HIDDEN_FEATURES, :] = np.asarray(p["fw2"], np.float32).T
    buf[R_FB2, :] = np.asarray(p["fb2"], np.float32)[0]
    buf[R_SRC1:R_SRC1 + N_HEADS, :] = src_ones
    buf[R_SUM1:R_SUM1 + HN, 0:N_HEADS] = sum_ones
    buf[R_BLKM:R_BLKM + HN, :] = blk_mask
    buf[R_DIAG:R_DIAG + N_NODES, :] = diag_m
    return jnp.asarray(buf)


def pack_inputs(xs, adjs):
    """One f32 slab per graph: lanes 0:16 = x, lanes 16:48 = per-head tiled fill mask
    (1.0 where adj == 0). Single input DMA per grid step."""
    xs = np.asarray(xs, np.float32)                       # (B, N, Fin)
    adjs = np.asarray(adjs, np.float32)                   # (B, N, N)
    fill = (adjs == 0.0).astype(np.float32)
    fill_t = np.tile(fill, (1, 1, N_HEADS))               # (B, N, H*N)
    return jnp.asarray(np.concatenate([xs, fill_t], axis=-1))   # (B, N, 48)


def gat_forward(slab, packed_params):
    B, n, _ = slab.shape
    return pl.pallas_call(
        gat_kernel,
        out_shape=jax.ShapeDtypeStruct((B, n, OUT_FEATURES), jnp.float32),
        grid=(B,),
        in_specs=[
            pl.BlockSpec((1, n, IN_LANES), lambda b: (b, 0, 0)),
            pl.BlockSpec((P_ROWS, P_LANES), lambda b: (0, 0)),   # resident: DMA'd once
        ],
        out_specs=pl.BlockSpec((1, n, OUT_FEATURES), lambda b: (b, 0, 0)),
        compiler_params=pltpu.CompilerParams(dimension_semantics=("parallel",)),
    )(slab, packed_params)


# ------------------------- pure-JAX reference --------------------------------
def gat_reference(x, adj, p):
    n = x.shape[0]

    def gal(xx, W, A, n_heads, n_hidden, is_concat):
        g = (xx @ W.T).reshape(n, n_heads, n_hidden)
        s_src = jnp.einsum("nhf,f->nh", g, A[0])
        s_dst = jnp.einsum("nhf,f->nh", g, A[1])
        e = s_src[:, None, :] + s_dst[None, :, :]          # (n, n, H), e[i, j, h]
        e = jnp.where(e >= 0, e, NEG_SLOPE * e)
        e = jnp.where(adj[:, :, None] == 0, 1.0, e)
        a = jax.nn.softmax(e, axis=1)
        res = jnp.einsum("ijh,jhf->ihf", a, g)
        if is_concat:
            return res.reshape(n, n_heads * n_hidden)
        return res.mean(axis=1)

    x1 = gal(x, p["w1"], p["a1"], N_HEADS, H1, True)
    x2 = gal(x1, p["w2"], p["a2"], 1, OUT_FEATURES, False)
    hmid = jax.nn.relu(x2 @ p["fw1"].T + p["fb1"][0])
    y = hmid @ p["fw2"].T + p["fb2"][0]
    return jax.nn.softmax(y, axis=0)


if __name__ == "__main__":
    key = jax.random.PRNGKey(0)
    ks = jax.random.split(key, 10)

    # ---- deterministic parameter init (shapes from the module __init__) -----
    params = {
        # attention1: nn.Linear(in_features, n_hidden*H, bias=False) -> weight (H*h1, Fin)
        "w1": 0.1 * jax.random.normal(ks[0], (HIDDEN_FEATURES, IN_FEATURES), jnp.float32),
        # attention1: nn.Linear(2*h1, 1, bias=False) -> weight (1, 2*h1), split into (2, h1)
        "a1": (0.1 * jax.random.normal(ks[1], (1, 2 * H1), jnp.float32)).reshape(2, H1),
        # attention2: nn.Linear(hidden, out, bias=False) -> weight (Fout, Fhid)
        "w2": 0.1 * jax.random.normal(ks[2], (OUT_FEATURES, HIDDEN_FEATURES), jnp.float32),
        # attention2: nn.Linear(2*out, 1, bias=False) -> (1, 2*Fout) split into (2, Fout)
        "a2": (0.1 * jax.random.normal(ks[3], (1, 2 * OUT_FEATURES), jnp.float32)).reshape(2, OUT_FEATURES),
        # feed-forward
        "fw1": 0.1 * jax.random.normal(ks[4], (HIDDEN_FEATURES, OUT_FEATURES), jnp.float32),
        "fb1": 0.1 * jax.random.normal(ks[5], (1, HIDDEN_FEATURES), jnp.float32),
        "fw2": 0.1 * jax.random.normal(ks[6], (OUT_FEATURES, HIDDEN_FEATURES), jnp.float32),
        "fb2": 0.1 * jax.random.normal(ks[7], (1, OUT_FEATURES), jnp.float32),
    }

    # ---- deterministic batched inputs (B independent graphs) -----------------
    B = 4
    xs = jax.random.normal(ks[8], (B, N_NODES, IN_FEATURES), jnp.float32)
    adjs = (jax.random.uniform(ks[9], (B, N_NODES, N_NODES)) > 0.4).astype(jnp.float32)
    adjs = jnp.maximum(adjs, jnp.eye(N_NODES, dtype=jnp.float32)[None])   # keep self-loops

    packed = pack_params(params)
    slab = pack_inputs(xs, adjs)

    out = gat_forward(slab, packed)
    out = jax.block_until_ready(out)

    assert out.shape == (B, N_NODES, OUT_FEATURES)
    assert bool(jnp.all(jnp.isfinite(out)))

    with jax.default_matmul_precision("float32"):
        for b in range(B):
            ref = gat_reference(xs[b], adjs[b], params)
            ref = jax.block_until_ready(ref)
            assert jnp.allclose(out[b], ref, atol=4e-3, rtol=3e-2), f"mismatch vs reference (graph {b})"

    print("KERNEL_OK")
</pallas_src>

<mosaic_0001>
module attributes {stable_mosaic.version = 11 : i64} {
  func.func @gat_kernel(%arg0: i32, %arg1: memref<1x8x48xf32, #tpu.memory_space<vmem>>, %arg2: memref<304x32xf32, #tpu.memory_space<vmem>>, %arg3: memref<1x8x32xf32, #tpu.memory_space<vmem>>) attributes {dimension_semantics = [#tpu.dimension_semantics<parallel>], iteration_bounds = array<i64: 4>, scalar_prefetch = 0 : i64, scratch_operands = 0 : i64, tpu.core_type = #tpu.core_type<tc>, window_params = [{transform_indices = @transform_0, window_bounds = array<i64: 1, 8, 48>}, {pipeline_mode = #tpu.pipeline_mode<synchronous>, transform_indices = @transform_1, window_bounds = array<i64: 304, 32>}, {transform_indices = @transform_2, window_bounds = array<i64: 1, 8, 32>}]} {
    %c0 = arith.constant 0 : index
    %c0_0 = arith.constant 0 : index
    %c0_1 = arith.constant 0 : index
    %0 = vector.load %arg1[%c0, %c0_0, %c0_1] : memref<1x8x48xf32, #tpu.memory_space<vmem>>, vector<1x8x48xf32>
    %1 = vector.shape_cast %0 : vector<1x8x48xf32> to vector<8x48xf32>
    %2 = vector.extract_strided_slice %1 {offsets = [0, 16], sizes = [8, 32], strides = [1, 1]} : vector<8x48xf32> to vector<8x32xf32>
    %cst = arith.constant 0.000000e+00 : f32
    %3 = vector.broadcast %cst : f32 to vector<8x32xf32>
    %4 = arith.cmpf one, %2, %3 : vector<8x32xf32>
    %c0_2 = arith.constant 0 : index
    %c0_3 = arith.constant 0 : index
    %5 = vector.load %arg2[%c0_2, %c0_3] : memref<304x32xf32, #tpu.memory_space<vmem>>, vector<48x32xf32>
    %c48 = arith.constant 48 : index
    %c0_4 = arith.constant 0 : index
    %6 = vector.load %arg2[%c48, %c0_4] : memref<304x32xf32, #tpu.memory_space<vmem>>, vector<32x8xf32>
    %c80 = arith.constant 80 : index
    %c0_5 = arith.constant 0 : index
    %7 = vector.load %arg2[%c80, %c0_5] : memref<304x32xf32, #tpu.memory_space<vmem>>, vector<32x32xf32>
    %c112 = arith.constant 112 : index
    %c0_6 = arith.constant 0 : index
    %8 = vector.load %arg2[%c112, %c0_6] : memref<304x32xf32, #tpu.memory_space<vmem>>, vector<32x2xf32>
    %c144 = arith.constant 144 : index
    %c0_7 = arith.constant 0 : index
    %9 = vector.load %arg2[%c144, %c0_7] : memref<304x32xf32, #tpu.memory_space<vmem>>, vector<32x32xf32>
    %c176 = arith.constant 176 : index
    %c0_8 = arith.constant 0 : index
    %10 = vector.load %arg2[%c176, %c0_8] : memref<304x32xf32, #tpu.memory_space<vmem>>, vector<1x32xf32>
    %c184 = arith.constant 184 : index
    %c0_9 = arith.constant 0 : index
    %11 = vector.load %arg2[%c184, %c0_9] : memref<304x32xf32, #tpu.memory_space<vmem>>, vector<32x32xf32>
    %c216 = arith.constant 216 : index
    %c0_10 = arith.constant 0 : index
    %12 = vector.load %arg2[%c216, %c0_10] : memref<304x32xf32, #tpu.memory_space<vmem>>, vector<1x32xf32>
    %c224 = arith.constant 224 : index
    %c0_11 = arith.constant 0 : index
    %13 = vector.load %arg2[%c224, %c0_11] : memref<304x32xf32, #tpu.memory_space<vmem>>, vector<4x32xf32>
    %c232 = arith.constant 232 : index
    %c0_12 = arith.constant 0 : index
    %14 = vector.load %arg2[%c232, %c0_12] : memref<304x32xf32, #tpu.memory_space<vmem>>, vector<32x4xf32>
    %c264 = arith.constant 264 : index
    %c0_13 = arith.constant 0 : index
    %15 = vector.load %arg2[%c264, %c0_13] : memref<304x32xf32, #tpu.memory_space<vmem>>, vector<32x32xf32>
    %c296 = arith.constant 296 : index
    %c0_14 = arith.constant 0 : index
    %16 = vector.load %arg2[%c296, %c0_14] : memref<304x32xf32, #tpu.memory_space<vmem>>, vector<8x32xf32>
    %cst_15 = arith.constant dense<0.000000e+00> : vector<8x32xf32>
    %17 = tpu.matmul %1, %5, %cst_15 {dimension_numbers = #tpu.dot_dimension_numbers<[1], [0], [0], [1], [0, 0, 1, 1], [], []>} : vector<8x48xf32>, vector<48x32xf32>, vector<8x32xf32> -> vector<8x32xf32>
    %cst_16 = arith.constant dense<0.000000e+00> : vector<8x8xf32>
    %18 = tpu.matmul %17, %6, %cst_16 {dimension_numbers = #tpu.dot_dimension_numbers<[1], [0], [0], [1], [0, 0, 1, 1], [], []>} : vector<8x32xf32>, vector<32x8xf32>, vector<8x8xf32> -> vector<8x8xf32>
    %19 = vector.extract_strided_slice %18 {offsets = [0, 0], sizes = [8, 4], strides = [1, 1]} : vector<8x8xf32> to vector<8x4xf32>
    %20 = vector.extract_strided_slice %18 {offsets = [0, 4], sizes = [8, 4], strides = [1, 1]} : vector<8x8xf32> to vector<8x4xf32>
    %cst_17 = arith.constant dense<0.000000e+00> : vector<8x32xf32>
    %21 = tpu.matmul %19, %13, %cst_17 {dimension_numbers = #tpu.dot_dimension_numbers<[1], [0], [0], [1], [0, 0, 1, 1], [], []>} : vector<8x4xf32>, vector<4x32xf32>, vector<8x32xf32> -> vector<8x32xf32>
    %cst_18 = arith.constant dense<0.000000e+00> : vector<8x32xf32>
    %22 = tpu.matmul %20, %13, %cst_18 {dimension_numbers = #tpu.dot_dimension_numbers<[1], [0], [0], [1], [0, 0, 1, 1], [], []>} : vector<8x4xf32>, vector<4x32xf32>, vector<8x32xf32> -> vector<8x32xf32>
    %23 = arith.mulf %22, %16 : vector<8x32xf32>
    %cst_19 = arith.constant dense<0.000000e+00> : vector<32xf32>
    %24 = vector.multi_reduction <add>, %23, %cst_19 [0] : vector<8x32xf32> to vector<32xf32>
    %25 = vector.shape_cast %24 : vector<32xf32> to vector<1x32xf32>
    %26 = vector.broadcast %25 : vector<1x32xf32> to vector<8x32xf32>
    %27 = arith.addf %21, %26 : vector<8x32xf32>
    %cst_20 = arith.constant 0.000000e+00 : f32
    %28 = vector.broadcast %cst_20 : f32 to vector<8x32xf32>
    %29 = arith.cmpf oge, %27, %28 : vector<8x32xf32>
    %cst_21 = arith.constant 2.000000e-01 : f32
    %30 = vector.broadcast %cst_21 : f32 to vector<8x32xf32>
    %31 = arith.mulf %30, %27 : vector<8x32xf32>
    %32 = arith.select %29, %27, %31 : vector<8x32xi1>, vector<8x32xf32>
    %cst_22 = arith.constant 1.000000e+00 : f32
    %33 = vector.broadcast %cst_22 : f32 to vector<8x32xf32>
    %34 = arith.select %4, %33, %32 : vector<8x32xi1>, vector<8x32xf32>
    %cst_23 = arith.constant dense<0xFF800000> : vector<8xf32>
    %35 = vector.multi_reduction <maximumf>, %34, %cst_23 [1] : vector<8x32xf32> to vector<8xf32>
    %36 = vector.shape_cast %35 : vector<8xf32> to vector<8x1xf32>
    %37 = vector.broadcast %36 : vector<8x1xf32> to vector<8x32xf32>
    %38 = arith.subf %34, %37 : vector<8x32xf32>
    %39 = math.exp %38 : vector<8x32xf32>
    %cst_24 = arith.constant dense<0.000000e+00> : vector<8x4xf32>
    %40 = tpu.matmul %39, %14, %cst_24 {dimension_numbers = #tpu.dot_dimension_numbers<[1], [0], [0], [1], [0, 0, 1, 1], [], []>} : vector<8x32xf32>, vector<32x4xf32>, vector<8x4xf32> -> vector<8x4xf32>
    %41 = tpu.reciprocal %40 {approx = true} : vector<8x4xf32> -> vector<8x4xf32>
    %cst_25 = arith.constant dense<0.000000e+00> : vector<8x32xf32>
    %42 = tpu.matmul %41, %13, %cst_25 {dimension_numbers = #tpu.dot_dimension_numbers<[1], [0], [0], [1], [0, 0, 1, 1], [], []>} : vector<8x4xf32>, vector<4x32xf32>, vector<8x32xf32> -> vector<8x32xf32>
    %43 = arith.mulf %39, %42 : vector<8x32xf32>
    %44 = tpu.concatenate %17, %17, %17, %17 in 0 : vector<8x32xf32>, vector<8x32xf32>, vector<8x32xf32>, vector<8x32xf32> -> vector<32x32xf32>
    %45 = arith.mulf %44, %15 : vector<32x32xf32>
    %cst_26 = arith.constant dense<0.000000e+00> : vector<8x32xf32>
    %46 = tpu.matmul %43, %45, %cst_26 {dimension_numbers = #tpu.dot_dimension_numbers<[1], [0], [0], [1], [0, 0, 1, 1], [], []>} : vector<8x32xf32>, vector<32x32xf32>, vector<8x32xf32> -> vector<8x32xf32>
    %cst_27 = arith.constant dense<0.000000e+00> : vector<8x32xf32>
    %47 = tpu.matmul %46, %7, %cst_27 {dimension_numbers = #tpu.dot_dimension_numbers<[1], [0], [0], [1], [0, 0, 1, 1], [], []>} : vector<8x32xf32>, vector<32x32xf32>, vector<8x32xf32> -> vector<8x32xf32>
    %cst_28 = arith.constant dense<0.000000e+00> : vector<8x2xf32>
    %48 = tpu.matmul %47, %8, %cst_28 {dimension_numbers = #tpu.dot_dimension_numbers<[1], [0], [0], [1], [0, 0, 1, 1], [], []>} : vector<8x32xf32>, vector<32x2xf32>, vector<8x2xf32> -> vector<8x2xf32>
    %49 = vector.extract_strided_slice %48 {offsets = [0, 0], sizes = [8, 1], strides = [1, 1]} : vector<8x2xf32> to vector<8x1xf32>
    %50 = vector.extract_strided_slice %48 {offsets = [0, 1], sizes = [8, 1], strides = [1, 1]} : vector<8x2xf32> to vector<8x1xf32>
    %51 = tpu.transpose %50, [1, 0] : vector<8x1xf32> -> vector<1x8xf32>
    %52 = vector.broadcast %49 : vector<8x1xf32> to vector<8x8xf32>
    %53 = vector.broadcast %51 : vector<1x8xf32> to vector<8x8xf32>
    %54 = arith.addf %52, %53 : vector<8x8xf32>
    %cst_29 = arith.constant 0.000000e+00 : f32
    %55 = vector.broadcast %cst_29 : f32 to vector<8x8xf32>
    %56 = arith.cmpf oge, %54, %55 : vector<8x8xf32>
    %cst_30 = arith.constant 2.000000e-01 : f32
    %57 = vector.broadcast %cst_30 : f32 to vector<8x8xf32>
    %58 = arith.mulf %57, %54 : vector<8x8xf32>
    %59 = arith.select %56, %54, %58 : vector<8x8xi1>, vector<8x8xf32>
    %60 = vector.extract_strided_slice %4 {offsets = [0, 0], sizes = [8, 8], strides = [1, 1]} : vector<8x32xi1> to vector<8x8xi1>
    %cst_31 = arith.constant 1.000000e+00 : f32
    %61 = vector.broadcast %cst_31 : f32 to vector<8x8xf32>
    %62 = arith.select %60, %61, %59 : vector<8x8xi1>, vector<8x8xf32>
    %cst_32 = arith.constant dense<0xFF800000> : vector<8xf32>
    %63 = vector.multi_reduction <maximumf>, %62, %cst_32 [1] : vector<8x8xf32> to vector<8xf32>
    %64 = vector.shape_cast %63 : vector<8xf32> to vector<8x1xf32>
    %65 = vector.broadcast %64 : vector<8x1xf32> to vector<8x8xf32>
    %66 = arith.subf %62, %65 : vector<8x8xf32>
    %67 = math.exp %66 : vector<8x8xf32>
    %cst_33 = arith.constant dense<0.000000e+00> : vector<8xf32>
    %68 = vector.multi_reduction <add>, %67, %cst_33 [1] : vector<8x8xf32> to vector<8xf32>
    %69 = vector.shape_cast %68 : vector<8xf32> to vector<8x1xf32>
    %70 = tpu.reciprocal %69 {approx = true} : vector<8x1xf32> -> vector<8x1xf32>
    %71 = vector.broadcast %70 : vector<8x1xf32> to vector<8x8xf32>
    %72 = arith.mulf %67, %71 : vector<8x8xf32>
    %cst_34 = arith.constant dense<0.000000e+00> : vector<8x32xf32>
    %73 = tpu.matmul %72, %47, %cst_34 {dimension_numbers = #tpu.dot_dimension_numbers<[1], [0], [0], [1], [0, 0, 1, 1], [], []>} : vector<8x8xf32>, vector<8x32xf32>, vector<8x32xf32> -> vector<8x32xf32>
    %cst_35 = arith.constant dense<0.000000e+00> : vector<8x32xf32>
    %74 = tpu.matmul %73, %9, %cst_35 {dimension_numbers = #tpu.dot_dimension_numbers<[1], [0], [0], [1], [0, 0, 1, 1], [], []>} : vector<8x32xf32>, vector<32x32xf32>, vector<8x32xf32> -> vector<8x32xf32>
    %75 = vector.broadcast %10 : vector<1x32xf32> to vector<8x32xf32>
    %76 = arith.addf %74, %75 : vector<8x32xf32>
    %cst_36 = arith.constant 0.000000e+00 : f32
    %77 = vector.broadcast %cst_36 : f32 to vector<8x32xf32>
    %78 = arith.maximumf %76, %77 : vector<8x32xf32>
    %cst_37 = arith.constant dense<0.000000e+00> : vector<8x32xf32>
    %79 = tpu.matmul %78, %11, %cst_37 {dimension_numbers = #tpu.dot_dimension_numbers<[1], [0], [0], [1], [0, 0, 1, 1], [], []>} : vector<8x32xf32>, vector<32x32xf32>, vector<8x32xf32> -> vector<8x32xf32>
    %80 = vector.broadcast %12 : vector<1x32xf32> to vector<8x32xf32>
    %81 = arith.addf %79, %80 : vector<8x32xf32>
    %cst_38 = arith.constant dense<0xFF800000> : vector<32xf32>
    %82 = vector.multi_reduction <maximumf>, %81, %cst_38 [0] : vector<8x32xf32> to vector<32xf32>
    %83 = vector.shape_cast %82 : vector<32xf32> to vector<1x32xf32>
    %84 = vector.broadcast %83 : vector<1x32xf32> to vector<8x32xf32>
    %85 = arith.subf %81, %84 : vector<8x32xf32>
    %86 = math.exp %85 : vector<8x32xf32>
    %cst_39 = arith.constant dense<0.000000e+00> : vector<32xf32>
    %87 = vector.multi_reduction <add>, %86, %cst_39 [0] : vector<8x32xf32> to vector<32xf32>
    %88 = vector.shape_cast %87 : vector<32xf32> to vector<1x32xf32>
    %89 = vector.broadcast %88 : vector<1x32xf32> to vector<8x32xf32>
    %90 = arith.divf %86, %89 : vector<8x32xf32>
    %c0_40 = arith.constant 0 : index
    %c0_41 = arith.constant 0 : index
    %c0_42 = arith.constant 0 : index
    %91 = vector.load %arg3[%c0_40, %c0_41, %c0_42] : memref<1x8x32xf32, #tpu.memory_space<vmem>>, vector<1x8x32xf32>
    %92 = vector.shape_cast %91 : vector<1x8x32xf32> to vector<8x32xf32>
    %93 = vector.shape_cast %90 : vector<8x32xf32> to vector<1x8x32xf32>
    tpu.vector_store %arg3[%c0_40, %c0_41, %c0_42], %93 {strides = array<i32>} : memref<1x8x32xf32, #tpu.memory_space<vmem>>, vector<1x8x32xf32>,
    return
  }
  func.func @transform_0(%arg0: i32) -> (i32, i32, i32) {
    %c0_i32 = arith.constant 0 : i32
    %c0_i32_0 = arith.constant 0 : i32
    %c0_i32_1 = arith.constant 0 : i32
    return %arg0, %c0_i32, %c0_i32_0 : i32, i32, i32
  }
  func.func @transform_1(%arg0: i32) -> (i32, i32) {
    %c0_i32 = arith.constant 0 : i32
    %c0_i32_0 = arith.constant 0 : i32
    %c0_i32_1 = arith.constant 0 : i32
    return %c0_i32, %c0_i32_0 : i32, i32
  }
  func.func @transform_2(%arg0: i32) -> (i32, i32, i32) {
    %c0_i32 = arith.constant 0 : i32
    %c0_i32_0 = arith.constant 0 : i32
    %c0_i32_1 = arith.constant 0 : i32
    return %arg0, %c0_i32, %c0_i32_0 : i32, i32, i32
  }
}

</mosaic_0001>

<llo_original>
// kernel: tpu_custom_call.1
$region0: #{tpu_custom_call.1}
  #allocation0 [shape = 'u32[]', space=smem, size = 0x4, offset = 0x4, fixed_abs, tag = 'smem constant byte address 0x4 - core index']
  #allocation1 [shape = 'u32[144,128]{1,0:T(1,128)}', space=vmem, size = 0x12000, scoped, tag = 'internal scratch']
  %s0 = inlined_call_operand.vmem [shape: f32[4,8,48], index: 0, kind: input, shape index: {}]
  %s1 = inlined_call_operand.vmem [shape: f32[304,32], index: 1, kind: input, shape index: {}]
  %s2 = inlined_call_operand.hbm [shape: f32[4,8,32], index: 2, kind: output, shape index: {}]
  %s3 = sld [smem:[#allocation0]]
  $region41: #{tpu_custom_call.1} parent=0
    _
  %s5 = ssub.s32 1, %s3
  %s6 = scalar_select 0, %s5, %s3
  $region1: #{tpu_custom_call.1} parent=0
    #allocation2 [shape = 'u8[8192]{0}', space=vmem, size = 0x2000, scoped, tag = 'output window, operand 0']
    #allocation3 [shape = 's32[2]{0}', space=sflag, size = 0x8, scoped, tag = 'scoped memory for tpu_custom_call.1']
    %7 = vsyncpa [#allocation3], 0
    %s8 = scalar_lea.sflag [#allocation3], 1
    %9 = vsyncpa %s8, 0
    loop: start=0, step=1, limit=6
    $region2: #{tpu_custom_call.1} parent=1 // loop_pre_header
      _
    $region3: #{tpu_custom_call.1} parent=1 // loop_header
      %s11 = sphi 0, %s15
      %p12 = scmp.ge.s32.totalorder %s11, 6
      %s21 = sphi 0, %s23
      %s24 = sphi 0, %s21
      %s25 = sphi 0, %s24
      %s41 = sphi 0, %s25
      %s45 = sphi 0, %s45
      %s47 = sphi 0, %s45
      %s48 = sphi 0, %s47
      %s62 = sphi 0, %s48
      %s68 = sphi 0, %s70
      %s71 = sphi 0, %s68
      %s72 = sphi 0, %s71
      %s88 = sphi 0, %s72
    $region4: #{tpu_custom_call.1} parent=1 // loop_header_branch
      %14 = sbr.rel (%p12) target = $region8
    $region5: #{tpu_custom_call.1} parent=1 // loop_body
      %s16 = ssub.s32 %s11, 1
      %s17 = ssub.s32 %s11, 2
      %s18 = sadd.s32 %s11, 1
      %s19 = ssub.s32 %s11, %s18
      %p20 = scmp.eq.s32.totalorder %s19, 0
      %s22 = sadd.s32 %s21, 1
      %s23 = scalar_select %p20, %s21, %s22
      %p26 = pneg %p20
      %p27 = scmp.eq.s32.totalorder %s11, 3
      %p28 = por %p26, %p27
      %p29 = scmp.ne.s32.totalorder %s21, %s24
      %p30 = scmp.eq.s32.totalorder %s11, 0
      %p31 = por %p29, %p30
      %p32 = scmp.ne.s32.totalorder %s21, %s24
      %p33 = scmp.eq.s32.totalorder %s16, 3
      %p34 = por %p32, %p33
      %p35 = scmp.ne.s32.totalorder %s24, %s25
      %p36 = scmp.eq.s32.totalorder %s16, 0
      %p37 = por %p35, %p36
      %p38 = scmp.ne.s32.totalorder %s24, %s25
      %p39 = scmp.eq.s32.totalorder %s17, 3
      %p40 = por %p38, %p39
      %p42 = scmp.ne.s32.totalorder %s25, %s41
      %p43 = scmp.eq.s32.totalorder %s17, 0
      %p44 = por %p42, %p43
      %s46 = sadd.s32 %s45, 1
      %p49 = scmp.eq.s32.totalorder %s11, 3
      %p50 = scmp.ne.s32.totalorder %s45, %s47
      %p51 = scmp.eq.s32.totalorder %s11, 0
      %p52 = por %p50, %p51
      %p53 = scmp.ne.s32.totalorder %s45, %s47
      %p54 = scmp.eq.s32.totalorder %s16, 3
      %p55 = por %p53, %p54
      %p56 = scmp.ne.s32.totalorder %s47, %s48
      %p57 = scmp.eq.s32.totalorder %s16, 0
      %p58 = por %p56, %p57
      %p59 = scmp.ne.s32.totalorder %s47, %s48
      %p60 = scmp.eq.s32.totalorder %s17, 3
      %p61 = por %p59, %p60
      %p63 = scmp.ne.s32.totalorder %s48, %s62
      %p64 = scmp.eq.s32.totalorder %s17, 0
      %p65 = por %p63, %p64
      %s66 = ssub.s32 %s11, %s18
      %p67 = scmp.eq.s32.totalorder %s66, 0
      %s69 = sadd.s32 %s68, 1
      %s70 = scalar_select %p67, %s68, %s69
      %p73 = pneg %p67
      %p74 = scmp.eq.s32.totalorder %s11, 3
      %p75 = por %p73, %p74
      %p76 = scmp.ne.s32.totalorder %s68, %s71
      %p77 = scmp.eq.s32.totalorder %s11, 0
      %p78 = por %p76, %p77
      %p79 = scmp.ne.s32.totalorder %s68, %s71
      %p80 = scmp.eq.s32.totalorder %s16, 3
      %p81 = por %p79, %p80
      %p82 = scmp.ne.s32.totalorder %s71, %s72
      %p83 = scmp.eq.s32.totalorder %s16, 0
      %p84 = por %p82, %p83
      %p85 = scmp.ne.s32.totalorder %s71, %s72
      %p86 = scmp.eq.s32.totalorder %s17, 3
      %p87 = por %p85, %p86
      %p89 = scmp.ne.s32.totalorder %s72, %s88
      %p90 = scmp.eq.s32.totalorder %s17, 0
      %p91 = por %p89, %p90
      %p92 = scmp.le.s32.totalorder 1, %s11
      %p93 = scmp.lt.s32.totalorder %s11, 5
      %p94 = pnand %p92, %p93
      %p95 = pneg %p94
      // Predicated region
      $region9: #{tpu_custom_call.1} parent=5 // pred_check
        _
      $region10: #{tpu_custom_call.1} parent=5 // pred_check_branch
        %97 = sbr.rel (%p94) target = $region12
      $region11: #{tpu_custom_call.1} parent=5 // pred_region
        %s98 = ssub.s32 %s11, 1
        // Predicated region
        $region13: #{tpu_custom_call.1} parent=11 // pred_check
          %p99 = pneg %p58
        $region14: #{tpu_custom_call.1} parent=11 // pred_check_branch
          %101 = sbr.rel (%p99) target = $region16
        $region15: #{tpu_custom_call.1} parent=11 // pred_region
          _
        $region16: #{tpu_custom_call.1} parent=11 // pred_fallthru
          _
      $region12: #{tpu_custom_call.1} parent=5 // pred_fallthru
        _
      %p102 = scmp.lt.s32.totalorder %s11, 4
      // Predicated region
      $region17: #{tpu_custom_call.1} parent=5 // pred_check
        %p103 = pneg %p102
      $region18: #{tpu_custom_call.1} parent=5 // pred_check_branch
        %105 = sbr.rel (%p103) target = $region20
      $region19: #{tpu_custom_call.1} parent=5 // pred_region
        // Predicated region
        $region21: #{tpu_custom_call.1} parent=19 // pred_check
          %p106 = pneg %p31
        $region22: #{tpu_custom_call.1} parent=19 // pred_check_branch
          %108 = sbr.rel (%p106) target = $region24
        $region23: #{tpu_custom_call.1} parent=19 // pred_region
          %p109 = scmp.lt.s32.totalorder %s11, 3
          %s110 = scalar_select %p109, %s11, 3
          %s111 = smul.addr %s110, 8
          %s112 = scalar_lea.vmem %s0, %s111
        $region24: #{tpu_custom_call.1} parent=19 // pred_fallthru
          _
      $region20: #{tpu_custom_call.1} parent=5 // pred_fallthru
        _
      %p113 = scmp.le.s32.totalorder 1, %s11
      %p114 = scmp.lt.s32.totalorder %s11, 5
      %p115 = pnand %p113, %p114
      %p116 = pneg %p115
      // Predicated region
      $region25: #{tpu_custom_call.1} parent=5 // pred_check
        _
      $region26: #{tpu_custom_call.1} parent=5 // pred_check_branch
        %118 = sbr.rel (%p115) target = $region28
      $region27: #{tpu_custom_call.1} parent=5 // pred_region
        %s119 = ssub.s32 %s11, 1
        %p120 = scmp.lt.s32.totalorder %s16, 3
        %s121 = scalar_select %p120, %s16, 3
        %s122 = smul.addr %s121, 8
        %s123 = scalar_lea.vmem %s0, %s122
        %p124 = pneg %p37
        %p125 = pneg %p34
        %p126 = pneg %p58
        %p127 = pneg %p55
        %p128 = pneg %p84
        %p129 = pneg %p81
        %s130 = sand.u32 %s71, 1
        %s131 = scalar_lea.sflag [#allocation3], %s130
        %s132 = sand.u32 %s71, 1
        %s133 = smul.addr %s132, 8
        %s134 = scalar_lea.vmem [#allocation2], %s133
        %p135 = scmp.lt.s32.totalorder %s16, 3
        %s136 = scalar_select %p135, %s16, 3
        %s137 = smul.addr %s136, 8
        %s138 = scalar_lea.vmem %s0, %s137
        %v139 = vld [vmem:[%s138] sm:$0xff]
        %vm140 = vcmp.ne.f32.partialorder %v139, 0.0
        %v141 = vld [vmem:[%s1] sm:$0xff]
        %v142 = vld [vmem:[%s1 + $0x8] sm:$0xff]
        %v143 = vld [vmem:[%s1 + $0x10] sm:$0xff]
        %v144 = vld [vmem:[%s1 + $0x18] sm:$0xff]
        %v145 = vld [vmem:[%s1 + $0x20] sm:$0xff]
        %v146 = vld [vmem:[%s1 + $0x28] sm:$0xff]
        %v147 = vld [vmem:[%s1 + $0x30] sm:$0xff]
        %v148 = vld [vmem:[%s1 + $0x38] sm:$0xff]
        %v149 = vld [vmem:[%s1 + $0x40] sm:$0xff]
        %v150 = vld [vmem:[%s1 + $0x48] sm:$0xff]
        %v151 = vld [vmem:[%s1 + $0x50] sm:$0xff]
        %v152 = vld [vmem:[%s1 + $0x58] sm:$0xff]
        %v153 = vld [vmem:[%s1 + $0x60] sm:$0xff]
        %v154 = vld [vmem:[%s1 + $0x68] sm:$0xff]
        %v155 = vld [vmem:[%s1 + $0x70] sm:$0xff]
        %v156 = vld [vmem:[%s1 + $0x78] sm:$0xff]
        %v157 = vld [vmem:[%s1 + $0x80] sm:$0xff]
        %v158 = vld [vmem:[%s1 + $0x88] sm:$0xff]
        %v159 = vld [vmem:[%s1 + $0x90] sm:$0xff]
        %v160 = vld [vmem:[%s1 + $0x98] sm:$0xff]
        %v161 = vld [vmem:[%s1 + $0xa0] sm:$0xff]
        %v162 = vld [vmem:[%s1 + $0xa8] sm:$0xff]
        %v163 = vld [vmem:[%s1 + $0xb0] sm:$0x1]
        %v164 = vld [vmem:[%s1 + $0xb8] sm:$0xff]
        %v165 = vld [vmem:[%s1 + $0xc0] sm:$0xff]
        %v166 = vld [vmem:[%s1 + $0xc8] sm:$0xff]
        %v167 = vld [vmem:[%s1 + $0xd0] sm:$0xff]
        %v168 = vld [vmem:[%s1 + $0xd8] sm:$0x1]
        %v169 = vld [vmem:[%s1 + $0xe0] sm:$0xf]
        %v170 = vld [vmem:[%s1 + $0xe8] sm:$0xff]
        %v171 = vld [vmem:[%s1 + $0xf0] sm:$0xff]
        %v172 = vld [vmem:[%s1 + $0xf8] sm:$0xff]
        %v173 = vld [vmem:[%s1 + $0x100] sm:$0xff]
        %v174 = vld [vmem:[%s1 + $0x108] sm:$0xff]
        %v175 = vld [vmem:[%s1 + $0x110] sm:$0xff]
        %v176 = vld [vmem:[%s1 + $0x118] sm:$0xff]
        %v177 = vld [vmem:[%s1 + $0x120] sm:$0xff]
        %v178 = vld [vmem:[%s1 + $0x128] sm:$0xff]
        %vm179 = vcmask 392192
        %v181 = vsel %vm179, %v139, 0
        %183 = vmatprep.subr.mxu0 0.0
        %184 = vmatpush1.msra.mxu0 %v141
        %185 = vmatprep.subr.mxu0 0.0
        %186 = vmatpush1.msra.mxu0 %v142
        %187 = vmatprep.subr.mxu0 0.0
        %188 = vmatpush1.msra.mxu0 %v143
        %189 = vmatprep.subr.mxu0 0.0
        %190 = vmatpush1.msra.mxu0 %v144
        %191 = vmatprep.subr.mxu0 0.0
        %192 = vmatpush1.msra.mxu0 %v145
        %193 = vmatprep.subr.mxu0 0.0
        %194 = vmatpush1.msra.mxu0 %v146
        %195 = vmatprep.subr.mxu0 0.0
        %196 = vmatpush1.msra.mxu0 0.0
        %197 = vmatprep.subr.mxu0 0.0
        %198 = vmatpush1.msra.mxu0 0.0
        %199 = vmatprep.subr.mxu0 0.0
        %200 = vmatpush1.msra.mxu0 0.0
        %201 = vmatprep.subr.mxu0 0.0
        %202 = vmatpush1.msra.mxu0 0.0
        %203 = vmatprep.subr.mxu0 0.0
        %204 = vmatpush1.msra.mxu0 0.0
        %205 = vmatprep.subr.mxu0 0.0
        %206 = vmatpush1.msra.mxu0 0.0
        %207 = vmatprep.subr.mxu0 0.0
        %208 = vmatpush1.msra.mxu0 0.0
        %209 = vmatprep.subr.mxu0 0.0
        %210 = vmatpush1.msra.mxu0 0.0
        %211 = vmatprep.subr.mxu0 0.0
        %212 = vmatpush1.msra.mxu0 0.0
        %213 = vmatprep.subr.mxu0 0.0
        %214 = vmatpush1.msra.mxu0 0.0
        %215 = vmatprep.subr.mxu0 0.0
        %216 = vmatpush1.msra.mxu0 0.0
        %217 = vmatprep.subr.mxu0 0.0
        %218 = vmatpush1.msra.mxu0 0.0
        %219 = vmatprep.subr.mxu0 0.0
        %220 = vmatpush1.msra.mxu0 0.0
        %221 = vmatprep.subr.mxu0 0.0
        %222 = vmatpush1.msra.mxu0 0.0
        %223 = vmatprep.subr.mxu0 0.0
        %224 = vmatpush1.msra.mxu0 0.0
        %225 = vmatprep.subr.mxu0 0.0
        %226 = vmatpush1.msra.mxu0 0.0
        %227 = vmatprep.subr.mxu0 0.0
        %228 = vmatpush1.msra.mxu0 0.0
        %229 = vmatprep.subr.mxu0 0.0
        %230 = vmatpush1.msra.mxu0 0.0
        %231 = vmatprep.subr.mxu0 0.0
        %232 = vmatpush1.msra.mxu0 0.0
        %233 = vmatprep.subr.mxu0 0.0
        %234 = vmatpush1.msra.mxu0 0.0
        %235 = vmatprep.subr.mxu0 0.0
        %236 = vmatpush1.msra.mxu0 0.0
        %237 = vmatprep.subr.mxu0 0.0
        %238 = vmatpush1.msra.mxu0 0.0
        %239 = vmatprep.subr.mxu0 0.0
        %240 = vmatpush1.msra.mxu0 0.0
        %241 = vmatprep.subr.mxu0 0.0
        %242 = vmatpush1.msra.mxu0 0.0
        %243 = vmatprep.subr.mxu0 0.0
        %244 = vmatpush1.msra.mxu0 0.0
        %245 = vmatprep.subr.mxu0 0.0
        %246 = vmatpush1.msra.mxu0 0.0
        %247 = vmatprep.mubr.f32.mxu0 0.0
        %248 = vmatmul.mubr.f32.gmra.mrb[0].mxu0 %v181
        %v249 = vpop.f32.mrb[0].mxu0
        %v250 = vadd.f32 0.0, %v249
        %v251 = vpop.f32.mrb[0].mxu0
        %252 = vdwg.mxu0
        %vm253 = vcmask 261120
        %v255 = vsel %vm253, %v250, 0
        %257 = vmatprep.subr.mxu0 0.0
        %258 = vmatpush1.msra.mxu0 %v147
        %259 = vmatprep.subr.mxu0 0.0
        %260 = vmatpush1.msra.mxu0 %v148
        %261 = vmatprep.subr.mxu0 0.0
        %262 = vmatpush1.msra.mxu0 %v149
        %263 = vmatprep.subr.mxu0 0.0
        %264 = vmatpush1.msra.mxu0 %v150
        %265 = vmatprep.subr.mxu0 0.0
        %266 = vmatpush1.msra.mxu0 0.0
        %267 = vmatprep.subr.mxu0 0.0
        %268 = vmatpush1.msra.mxu0 0.0
        %269 = vmatprep.subr.mxu0 0.0
        %270 = vmatpush1.msra.mxu0 0.0
        %271 = vmatprep.subr.mxu0 0.0
        %272 = vmatpush1.msra.mxu0 0.0
        %273 = vmatprep.subr.mxu0 0.0
        %274 = vmatpush1.msra.mxu0 0.0
        %275 = vmatprep.subr.mxu0 0.0
        %276 = vmatpush1.msra.mxu0 0.0
        %277 = vmatprep.subr.mxu0 0.0
        %278 = vmatpush1.msra.mxu0 0.0
        %279 = vmatprep.subr.mxu0 0.0
        %280 = vmatpush1.msra.mxu0 0.0
        %281 = vmatprep.subr.mxu0 0.0
        %282 = vmatpush1.msra.mxu0 0.0
        %283 = vmatprep.subr.mxu0 0.0
        %284 = vmatpush1.msra.mxu0 0.0
        %285 = vmatprep.subr.mxu0 0.0
        %286 = vmatpush1.msra.mxu0 0.0
        %287 = vmatprep.subr.mxu0 0.0
        %288 = vmatpush1.msra.mxu0 0.0
        %289 = vmatprep.subr.mxu0 0.0
        %290 = vmatpush1.msra.mxu0 0.0
        %291 = vmatprep.subr.mxu0 0.0
        %292 = vmatpush1.msra.mxu0 0.0
        %293 = vmatprep.subr.mxu0 0.0
        %294 = vmatpush1.msra.mxu0 0.0
        %295 = vmatprep.subr.mxu0 0.0
        %296 = vmatpush1.msra.mxu0 0.0
        %297 = vmatprep.subr.mxu0 0.0
        %298 = vmatpush1.msra.mxu0 0.0
        %299 = vmatprep.subr.mxu0 0.0
        %300 = vmatpush1.msra.mxu0 0.0
        %301 = vmatprep.subr.mxu0 0.0
        %302 = vmatpush1.msra.mxu0 0.0
        %303 = vmatprep.subr.mxu0 0.0
        %304 = vmatpush1.msra.mxu0 0.0
        %305 = vmatprep.subr.mxu0 0.0
        %306 = vmatpush1.msra.mxu0 0.0
        %307 = vmatprep.subr.mxu0 0.0
        %308 = vmatpush1.msra.mxu0 0.0
        %309 = vmatprep.subr.mxu0 0.0
        %310 = vmatpush1.msra.mxu0 0.0
        %311 = vmatprep.subr.mxu0 0.0
        %312 = vmatpush1.msra.mxu0 0.0
        %313 = vmatprep.subr.mxu0 0.0
        %314 = vmatpush1.msra.mxu0 0.0
        %315 = vmatprep.subr.mxu0 0.0
        %316 = vmatpush1.msra.mxu0 0.0
        %317 = vmatprep.subr.mxu0 0.0
        %318 = vmatpush1.msra.mxu0 0.0
        %319 = vmatprep.subr.mxu0 0.0
        %320 = vmatpush1.msra.mxu0 0.0
        %321 = vmatprep.mubr.f32.mxu0 0.0
        %322 = vmatmul.mubr.f32.gmra.mrb[0].mxu0 %v255
        %v323 = vpop.f32.mrb[0].mxu0
        %v324 = vadd.f32 0.0, %v323
        %v325 = vpop.f32.mrb[0].mxu0
        %326 = vdwg.mxu0
        %328 = vrot.lane.b32.xlu0 %v324, 124
        %v329 = vpop.permute.xlu0 %328
        %vm330 = vcmask 31744
        %v331 = vsel %vm330, %v329, 0
        %vm333 = vcmask 1043456
        %v335 = vsel %vm333, %v169, 0
        %337 = vmatprep.subr.mxu0 0.0
        %338 = vmatpush1.msra.mxu0 %v335
        %339 = vmatprep.subr.mxu0 0.0
        %340 = vmatpush1.msra.mxu0 0.0
        %341 = vmatprep.subr.mxu0 0.0
        %342 = vmatpush1.msra.mxu0 0.0
        %343 = vmatprep.subr.mxu0 0.0
        %344 = vmatpush1.msra.mxu0 0.0
        %345 = vmatprep.subr.mxu0 0.0
        %346 = vmatpush1.msra.mxu0 0.0
        %347 = vmatprep.subr.mxu0 0.0
        %348 = vmatpush1.msra.mxu0 0.0
        %349 = vmatprep.subr.mxu0 0.0
        %350 = vmatpush1.msra.mxu0 0.0
        %351 = vmatprep.subr.mxu0 0.0
        %352 = vmatpush1.msra.mxu0 0.0
        %353 = vmatprep.subr.mxu0 0.0
        %354 = vmatpush1.msra.mxu0 0.0
        %355 = vmatprep.subr.mxu0 0.0
        %356 = vmatpush1.msra.mxu0 0.0
        %357 = vmatprep.subr.mxu0 0.0
        %358 = vmatpush1.msra.mxu0 0.0
        %359 = vmatprep.subr.mxu0 0.0
        %360 = vmatpush1.msra.mxu0 0.0
        %361 = vmatprep.subr.mxu0 0.0
        %362 = vmatpush1.msra.mxu0 0.0
        %363 = vmatprep.subr.mxu0 0.0
        %364 = vmatpush1.msra.mxu0 0.0
        %365 = vmatprep.subr.mxu0 0.0
        %366 = vmatpush1.msra.mxu0 0.0
        %367 = vmatprep.subr.mxu0 0.0
        %368 = vmatpush1.msra.mxu0 0.0
        %369 = vmatprep.subr.mxu0 0.0
        %370 = vmatpush1.msra.mxu0 0.0
        %371 = vmatprep.subr.mxu0 0.0
        %372 = vmatpush1.msra.mxu0 0.0
        %373 = vmatprep.subr.mxu0 0.0
        %374 = vmatpush1.msra.mxu0 0.0
        %375 = vmatprep.subr.mxu0 0.0
        %376 = vmatpush1.msra.mxu0 0.0
        %377 = vmatprep.subr.mxu0 0.0
        %378 = vmatpush1.msra.mxu0 0.0
        %379 = vmatprep.subr.mxu0 0.0
        %380 = vmatpush1.msra.mxu0 0.0
        %381 = vmatprep.subr.mxu0 0.0
        %382 = vmatpush1.msra.mxu0 0.0
        %383 = vmatprep.subr.mxu0 0.0
        %384 = vmatpush1.msra.mxu0 0.0
        %385 = vmatprep.subr.mxu0 0.0
        %386 = vmatpush1.msra.mxu0 0.0
        %387 = vmatprep.subr.mxu0 0.0
        %388 = vmatpush1.msra.mxu0 0.0
        %389 = vmatprep.subr.mxu0 0.0
        %390 = vmatpush1.msra.mxu0 0.0
        %391 = vmatprep.subr.mxu0 0.0
        %392 = vmatpush1.msra.mxu0 0.0
        %393 = vmatprep.subr.mxu0 0.0
        %394 = vmatpush1.msra.mxu0 0.0
        %395 = vmatprep.subr.mxu0 0.0
        %396 = vmatpush1.msra.mxu0 0.0
        %397 = vmatprep.subr.mxu0 0.0
        %398 = vmatpush1.msra.mxu0 0.0
        %399 = vmatprep.subr.mxu0 0.0
        %400 = vmatpush1.msra.mxu0 0.0
        %401 = vmatprep.mubr.f32.mxu0 0.0
        %402 = vmatmul.mubr.f32.gmra.mrb[0].mxu0 %v331
        %v403 = vpop.f32.mrb[0].mxu0
        %v404 = vadd.f32 0.0, %v403
        %v405 = vpop.f32.mrb[0].mxu0
        %406 = vdwg.mxu0
        %v407 = vmul.f32 %v404, %v178
        %v408 = vsel %vm253, %v407, 0.0
        %v409 = vrot.slane %v408, 4
        %v410 = vadd.f32 %v408, %v409
        %v411 = vrot.slane %v410, 2
        %v412 = vadd.f32 %v410, %v411
        %v413 = vrot.slane %v412, 1
        %v414 = vadd.f32 %v412, %v413
        %v415 = vsel %vm330, %v324, 0
        %417 = vmatprep.subr.mxu0 0.0
        %418 = vmatpush1.msra.mxu0 %v335
        %419 = vmatprep.subr.mxu0 0.0
        %420 = vmatpush1.msra.mxu0 0.0
        %421 = vmatprep.subr.mxu0 0.0
        %422 = vmatpush1.msra.mxu0 0.0
        %423 = vmatprep.subr.mxu0 0.0
        %424 = vmatpush1.msra.mxu0 0.0
        %425 = vmatprep.subr.mxu0 0.0
        %426 = vmatpush1.msra.mxu0 0.0
        %427 = vmatprep.subr.mxu0 0.0
        %428 = vmatpush1.msra.mxu0 0.0
        %429 = vmatprep.subr.mxu0 0.0
        %430 = vmatpush1.msra.mxu0 0.0
        %431 = vmatprep.subr.mxu0 0.0
        %432 = vmatpush1.msra.mxu0 0.0
        %433 = vmatprep.subr.mxu0 0.0
        %434 = vmatpush1.msra.mxu0 0.0
        %435 = vmatprep.subr.mxu0 0.0
        %436 = vmatpush1.msra.mxu0 0.0
        %437 = vmatprep.subr.mxu0 0.0
        %438 = vmatpush1.msra.mxu0 0.0
        %439 = vmatprep.subr.mxu0 0.0
        %440 = vmatpush1.msra.mxu0 0.0
        %441 = vmatprep.subr.mxu0 0.0
        %442 = vmatpush1.msra.mxu0 0.0
        %443 = vmatprep.subr.mxu0 0.0
        %444 = vmatpush1.msra.mxu0 0.0
        %445 = vmatprep.subr.mxu0 0.0
        %446 = vmatpush1.msra.mxu0 0.0
        %447 = vmatprep.subr.mxu0 0.0
        %448 = vmatpush1.msra.mxu0 0.0
        %449 = vmatprep.subr.mxu0 0.0
        %450 = vmatpush1.msra.mxu0 0.0
        %451 = vmatprep.subr.mxu0 0.0
        %452 = vmatpush1.msra.mxu0 0.0
        %453 = vmatprep.subr.mxu0 0.0
        %454 = vmatpush1.msra.mxu0 0.0
        %455 = vmatprep.subr.mxu0 0.0
        %456 = vmatpush1.msra.mxu0 0.0
        %457 = vmatprep.subr.mxu0 0.0
        %458 = vmatpush1.msra.mxu0 0.0
        %459 = vmatprep.subr.mxu0 0.0
        %460 = vmatpush1.msra.mxu0 0.0
        %461 = vmatprep.subr.mxu0 0.0
        %462 = vmatpush1.msra.mxu0 0.0
        %463 = vmatprep.subr.mxu0 0.0
        %464 = vmatpush1.msra.mxu0 0.0
        %465 = vmatprep.subr.mxu0 0.0
        %466 = vmatpush1.msra.mxu0 0.0
        %467 = vmatprep.subr.mxu0 0.0
        %468 = vmatpush1.msra.mxu0 0.0
        %469 = vmatprep.subr.mxu0 0.0
        %470 = vmatpush1.msra.mxu0 0.0
        %471 = vmatprep.subr.mxu0 0.0
        %472 = vmatpush1.msra.mxu0 0.0
        %473 = vmatprep.subr.mxu0 0.0
        %474 = vmatpush1.msra.mxu0 0.0
        %475 = vmatprep.subr.mxu0 0.0
        %476 = vmatpush1.msra.mxu0 0.0
        %477 = vmatprep.subr.mxu0 0.0
        %478 = vmatpush1.msra.mxu0 0.0
        %479 = vmatprep.subr.mxu0 0.0
        %480 = vmatpush1.msra.mxu0 0.0
        %481 = vmatprep.mubr.f32.mxu0 0.0
        %482 = vmatmul.mubr.f32.gmra.mrb[0].mxu0 %v415
        %v483 = vpop.f32.mrb[0].mxu0
        %v484 = vadd.f32 %v414, %v483
        %v485 = vpop.f32.mrb[0].mxu0
        %486 = vdwg.mxu0
        %vm487 = vcmp.ge.f32.partialorder %v484, 0.0
        %v488 = vmul.f32 %v484, 0.2
        %v489 = vsel %vm487, %v484, %v488
        %491 = vrot.lane.b32.xlu0 %v489, 16
        %v492 = vpop.permute.xlu0 %491
        %v494 = vsel %vm140, 1.0, %v492
        %vm495 = vcmask 392320
        %v496 = vsel %vm495, %v494, -inf
        %497 = vmax.xlane.f32.xlu0 %v496
        %v498 = vpop.xlane.xlu0 %497
        %v499 = vsub.f32 %v494, %v498
        %v500 = vmul.f32 %v499, 1.442695
        %v501 = vpow.pop %v500
        %503 = vrot.lane.b32.xlu0 %v501, 112
        %v504 = vpop.permute.xlu0 %503
        %v505 = vsel %vm253, %v504, 0
        %507 = vmatprep.subr.mxu0 0.0
        %508 = vmatpush1.msra.mxu0 %v170
        %509 = vmatprep.subr.mxu0 0.0
        %510 = vmatpush1.msra.mxu0 %v171
        %511 = vmatprep.subr.mxu0 0.0
        %512 = vmatpush1.msra.mxu0 %v172
        %513 = vmatprep.subr.mxu0 0.0
        %514 = vmatpush1.msra.mxu0 %v173
        %515 = vmatprep.subr.mxu0 0.0
        %516 = vmatpush1.msra.mxu0 0.0
        %517 = vmatprep.subr.mxu0 0.0
        %518 = vmatpush1.msra.mxu0 0.0
        %519 = vmatprep.subr.mxu0 0.0
        %520 = vmatpush1.msra.mxu0 0.0
        %521 = vmatprep.subr.mxu0 0.0
        %522 = vmatpush1.msra.mxu0 0.0
        %523 = vmatprep.subr.mxu0 0.0
        %524 = vmatpush1.msra.mxu0 0.0
        %525 = vmatprep.subr.mxu0 0.0
        %526 = vmatpush1.msra.mxu0 0.0
        %527 = vmatprep.subr.mxu0 0.0
        %528 = vmatpush1.msra.mxu0 0.0
        %529 = vmatprep.subr.mxu0 0.0
        %530 = vmatpush1.msra.mxu0 0.0
        %531 = vmatprep.subr.mxu0 0.0
        %532 = vmatpush1.msra.mxu0 0.0
        %533 = vmatprep.subr.mxu0 0.0
        %534 = vmatpush1.msra.mxu0 0.0
        %535 = vmatprep.subr.mxu0 0.0
        %536 = vmatpush1.msra.mxu0 0.0
        %537 = vmatprep.subr.mxu0 0.0
        %538 = vmatpush1.msra.mxu0 0.0
        %539 = vmatprep.subr.mxu0 0.0
        %540 = vmatpush1.msra.mxu0 0.0
        %541 = vmatprep.subr.mxu0 0.0
        %542 = vmatpush1.msra.mxu0 0.0
        %543 = vmatprep.subr.mxu0 0.0
        %544 = vmatpush1.msra.mxu0 0.0
        %545 = vmatprep.subr.mxu0 0.0
        %546 = vmatpush1.msra.mxu0 0.0
        %547 = vmatprep.subr.mxu0 0.0
        %548 = vmatpush1.msra.mxu0 0.0
        %549 = vmatprep.subr.mxu0 0.0
        %550 = vmatpush1.msra.mxu0 0.0
        %551 = vmatprep.subr.mxu0 0.0
        %552 = vmatpush1.msra.mxu0 0.0
        %553 = vmatprep.subr.mxu0 0.0
        %554 = vmatpush1.msra.mxu0 0.0
        %555 = vmatprep.subr.mxu0 0.0
        %556 = vmatpush1.msra.mxu0 0.0
        %557 = vmatprep.subr.mxu0 0.0
        %558 = vmatpush1.msra.mxu0 0.0
        %559 = vmatprep.subr.mxu0 0.0
        %560 = vmatpush1.msra.mxu0 0.0
        %561 = vmatprep.subr.mxu0 0.0
        %562 = vmatpush1.msra.mxu0 0.0
        %563 = vmatprep.subr.mxu0 0.0
        %564 = vmatpush1.msra.mxu0 0.0
        %565 = vmatprep.subr.mxu0 0.0
        %566 = vmatpush1.msra.mxu0 0.0
        %567 = vmatprep.subr.mxu0 0.0
        %568 = vmatpush1.msra.mxu0 0.0
        %569 = vmatprep.subr.mxu0 0.0
        %570 = vmatpush1.msra.mxu0 0.0
        %571 = vmatprep.mubr.f32.mxu0 0.0
        %572 = vmatmul.mubr.f32.gmra.mrb[0].mxu0 %v505
        %v573 = vpop.f32.mrb[0].mxu0
        %v574 = vadd.f32 0.0, %v573
        %v575 = vpop.f32.mrb[0].mxu0
        %576 = vdwg.mxu0
        %v577 = vrcp.pop %v574
        %v579 = vsel %vm330, %v577, 0
        %581 = vmatprep.subr.mxu0 0.0
        %582 = vmatpush1.msra.mxu0 %v335
        %583 = vmatprep.subr.mxu0 0.0
        %584 = vmatpush1.msra.mxu0 0.0
        %585 = vmatprep.subr.mxu0 0.0
        %586 = vmatpush1.msra.mxu0 0.0
        %587 = vmatprep.subr.mxu0 0.0
        %588 = vmatpush1.msra.mxu0 0.0
        %589 = vmatprep.subr.mxu0 0.0
        %590 = vmatpush1.msra.mxu0 0.0
        %591 = vmatprep.subr.mxu0 0.0
        %592 = vmatpush1.msra.mxu0 0.0
        %593 = vmatprep.subr.mxu0 0.0
        %594 = vmatpush1.msra.mxu0 0.0
        %595 = vmatprep.subr.mxu0 0.0
        %596 = vmatpush1.msra.mxu0 0.0
        %597 = vmatprep.subr.mxu0 0.0
        %598 = vmatpush1.msra.mxu0 0.0
        %599 = vmatprep.subr.mxu0 0.0
        %600 = vmatpush1.msra.mxu0 0.0
        %601 = vmatprep.subr.mxu0 0.0
        %602 = vmatpush1.msra.mxu0 0.0
        %603 = vmatprep.subr.mxu0 0.0
        %604 = vmatpush1.msra.mxu0 0.0
        %605 = vmatprep.subr.mxu0 0.0
        %606 = vmatpush1.msra.mxu0 0.0
        %607 = vmatprep.subr.mxu0 0.0
        %608 = vmatpush1.msra.mxu0 0.0
        %609 = vmatprep.subr.mxu0 0.0
        %610 = vmatpush1.msra.mxu0 0.0
        %611 = vmatprep.subr.mxu0 0.0
        %612 = vmatpush1.msra.mxu0 0.0
        %613 = vmatprep.subr.mxu0 0.0
        %614 = vmatpush1.msra.mxu0 0.0
        %615 = vmatprep.subr.mxu0 0.0
        %616 = vmatpush1.msra.mxu0 0.0
        %617 = vmatprep.subr.mxu0 0.0
        %618 = vmatpush1.msra.mxu0 0.0
        %619 = vmatprep.subr.mxu0 0.0
        %620 = vmatpush1.msra.mxu0 0.0
        %621 = vmatprep.subr.mxu0 0.0
        %622 = vmatpush1.msra.mxu0 0.0
        %623 = vmatprep.subr.mxu0 0.0
        %624 = vmatpush1.msra.mxu0 0.0
        %625 = vmatprep.subr.mxu0 0.0
        %626 = vmatpush1.msra.mxu0 0.0
        %627 = vmatprep.subr.mxu0 0.0
        %628 = vmatpush1.msra.mxu0 0.0
        %629 = vmatprep.subr.mxu0 0.0
        %630 = vmatpush1.msra.mxu0 0.0
        %631 = vmatprep.subr.mxu0 0.0
        %632 = vmatpush1.msra.mxu0 0.0
        %633 = vmatprep.subr.mxu0 0.0
        %634 = vmatpush1.msra.mxu0 0.0
        %635 = vmatprep.subr.mxu0 0.0
        %636 = vmatpush1.msra.mxu0 0.0
        %637 = vmatprep.subr.mxu0 0.0
        %638 = vmatpush1.msra.mxu0 0.0
        %639 = vmatprep.subr.mxu0 0.0
        %640 = vmatpush1.msra.mxu0 0.0
        %641 = vmatprep.subr.mxu0 0.0
        %642 = vmatpush1.msra.mxu0 0.0
        %643 = vmatprep.subr.mxu0 0.0
        %644 = vmatpush1.msra.mxu0 0.0
        %645 = vmatprep.mubr.f32.mxu0 0.0
        %646 = vmatmul.mubr.f32.gmra.mrb[0].mxu0 %v579
        %v647 = vpop.f32.mrb[0].mxu0
        %v648 = vadd.f32 0.0, %v647
        %v649 = vpop.f32.mrb[0].mxu0
        %650 = vdwg.mxu0
        %652 = vrot.lane.b32.xlu0 %v648, 16
        %v653 = vpop.permute.xlu0 %652
        %v655 = vmul.f32 %v501, %v653
        %v656 = vmul.f32 %v250, %v174
        %v657 = vmul.f32 %v250, %v175
        %v658 = vmul.f32 %v250, %v176
        %v659 = vmul.f32 %v250, %v177
        %661 = vrot.lane.b32.xlu0 %v655, 112
        %v662 = vpop.permute.xlu0 %661
        %v663 = vsel %vm253, %v662, 0
        %665 = vmatprep.subr.mxu0 0.0
        %666 = vmatpush1.msra.mxu0 %v656
        %667 = vmatprep.subr.mxu0 0.0
        %668 = vmatpush1.msra.mxu0 %v657
        %669 = vmatprep.subr.mxu0 0.0
        %670 = vmatpush1.msra.mxu0 %v658
        %671 = vmatprep.subr.mxu0 0.0
        %672 = vmatpush1.msra.mxu0 %v659
        %673 = vmatprep.subr.mxu0 0.0
        %674 = vmatpush1.msra.mxu0 0.0
        %675 = vmatprep.subr.mxu0 0.0
        %676 = vmatpush1.msra.mxu0 0.0
        %677 = vmatprep.subr.mxu0 0.0
        %678 = vmatpush1.msra.mxu0 0.0
        %679 = vmatprep.subr.mxu0 0.0
        %680 = vmatpush1.msra.mxu0 0.0
        %681 = vmatprep.subr.mxu0 0.0
        %682 = vmatpush1.msra.mxu0 0.0
        %683 = vmatprep.subr.mxu0 0.0
        %684 = vmatpush1.msra.mxu0 0.0
        %685 = vmatprep.subr.mxu0 0.0
        %686 = vmatpush1.msra.mxu0 0.0
        %687 = vmatprep.subr.mxu0 0.0
        %688 = vmatpush1.msra.mxu0 0.0
        %689 = vmatprep.subr.mxu0 0.0
        %690 = vmatpush1.msra.mxu0 0.0
        %691 = vmatprep.subr.mxu0 0.0
        %692 = vmatpush1.msra.mxu0 0.0
        %693 = vmatprep.subr.mxu0 0.0
        %694 = vmatpush1.msra.mxu0 0.0
        %695 = vmatprep.subr.mxu0 0.0
        %696 = vmatpush1.msra.mxu0 0.0
        %697 = vmatprep.subr.mxu0 0.0
        %698 = vmatpush1.msra.mxu0 0.0
        %699 = vmatprep.subr.mxu0 0.0
        %700 = vmatpush1.msra.mxu0 0.0
        %701 = vmatprep.subr.mxu0 0.0
        %702 = vmatpush1.msra.mxu0 0.0
        %703 = vmatprep.subr.mxu0 0.0
        %704 = vmatpush1.msra.mxu0 0.0
        %705 = vmatprep.subr.mxu0 0.0
        %706 = vmatpush1.msra.mxu0 0.0
        %707 = vmatprep.subr.mxu0 0.0
        %708 = vmatpush1.msra.mxu0 0.0
        %709 = vmatprep.subr.mxu0 0.0
        %710 = vmatpush1.msra.mxu0 0.0
        %711 = vmatprep.subr.mxu0 0.0
        %712 = vmatpush1.msra.mxu0 0.0
        %713 = vmatprep.subr.mxu0 0.0
        %714 = vmatpush1.msra.mxu0 0.0
        %715 = vmatprep.subr.mxu0 0.0
        %716 = vmatpush1.msra.mxu0 0.0
        %717 = vmatprep.subr.mxu0 0.0
        %718 = vmatpush1.msra.mxu0 0.0
        %719 = vmatprep.subr.mxu0 0.0
        %720 = vmatpush1.msra.mxu0 0.0
        %721 = vmatprep.subr.mxu0 0.0
        %722 = vmatpush1.msra.mxu0 0.0
        %723 = vmatprep.subr.mxu0 0.0
        %724 = vmatpush1.msra.mxu0 0.0
        %725 = vmatprep.subr.mxu0 0.0
        %726 = vmatpush1.msra.mxu0 0.0
        %727 = vmatprep.subr.mxu0 0.0
        %728 = vmatpush1.msra.mxu0 0.0
        %729 = vmatprep.mubr.f32.mxu0 0.0
        %730 = vmatmul.mubr.f32.gmra.mrb[0].mxu0 %v663
        %v731 = vpop.f32.mrb[0].mxu0
        %v732 = vadd.f32 0.0, %v731
        %v733 = vpop.f32.mrb[0].mxu0
        %734 = vdwg.mxu0
        %v736 = vsel %vm253, %v732, 0
        %738 = vmatprep.subr.mxu0 0.0
        %739 = vmatpush1.msra.mxu0 %v151
        %740 = vmatprep.subr.mxu0 0.0
        %741 = vmatpush1.msra.mxu0 %v152
        %742 = vmatprep.subr.mxu0 0.0
        %743 = vmatpush1.msra.mxu0 %v153
        %744 = vmatprep.subr.mxu0 0.0
        %745 = vmatpush1.msra.mxu0 %v154
        %746 = vmatprep.subr.mxu0 0.0
        %747 = vmatpush1.msra.mxu0 0.0
        %748 = vmatprep.subr.mxu0 0.0
        %749 = vmatpush1.msra.mxu0 0.0
        %750 = vmatprep.subr.mxu0 0.0
        %751 = vmatpush1.msra.mxu0 0.0
        %752 = vmatprep.subr.mxu0 0.0
        %753 = vmatpush1.msra.mxu0 0.0
        %754 = vmatprep.subr.mxu0 0.0
        %755 = vmatpush1.msra.mxu0 0.0
        %756 = vmatprep.subr.mxu0 0.0
        %757 = vmatpush1.msra.mxu0 0.0
        %758 = vmatprep.subr.mxu0 0.0
        %759 = vmatpush1.msra.mxu0 0.0
        %760 = vmatprep.subr.mxu0 0.0
        %761 = vmatpush1.msra.mxu0 0.0
        %762 = vmatprep.subr.mxu0 0.0
        %763 = vmatpush1.msra.mxu0 0.0
        %764 = vmatprep.subr.mxu0 0.0
        %765 = vmatpush1.msra.mxu0 0.0
        %766 = vmatprep.subr.mxu0 0.0
        %767 = vmatpush1.msra.mxu0 0.0
        %768 = vmatprep.subr.mxu0 0.0
        %769 = vmatpush1.msra.mxu0 0.0
        %770 = vmatprep.subr.mxu0 0.0
        %771 = vmatpush1.msra.mxu0 0.0
        %772 = vmatprep.subr.mxu0 0.0
        %773 = vmatpush1.msra.mxu0 0.0
        %774 = vmatprep.subr.mxu0 0.0
        %775 = vmatpush1.msra.mxu0 0.0
        %776 = vmatprep.subr.mxu0 0.0
        %777 = vmatpush1.msra.mxu0 0.0
        %778 = vmatprep.subr.mxu0 0.0
        %779 = vmatpush1.msra.mxu0 0.0
        %780 = vmatprep.subr.mxu0 0.0
        %781 = vmatpush1.msra.mxu0 0.0
        %782 = vmatprep.subr.mxu0 0.0
        %783 = vmatpush1.msra.mxu0 0.0
        %784 = vmatprep.subr.mxu0 0.0
        %785 = vmatpush1.msra.mxu0 0.0
        %786 = vmatprep.subr.mxu0 0.0
        %787 = vmatpush1.msra.mxu0 0.0
        %788 = vmatprep.subr.mxu0 0.0
        %789 = vmatpush1.msra.mxu0 0.0
        %790 = vmatprep.subr.mxu0 0.0
        %791 = vmatpush1.msra.mxu0 0.0
        %792 = vmatprep.subr.mxu0 0.0
        %793 = vmatpush1.msra.mxu0 0.0
        %794 = vmatprep.subr.mxu0 0.0
        %795 = vmatpush1.msra.mxu0 0.0
        %796 = vmatprep.subr.mxu0 0.0
        %797 = vmatpush1.msra.mxu0 0.0
        %798 = vmatprep.subr.mxu0 0.0
        %799 = vmatpush1.msra.mxu0 0.0
        %800 = vmatprep.subr.mxu0 0.0
        %801 = vmatpush1.msra.mxu0 0.0
        %802 = vmatprep.mubr.f32.mxu0 0.0
        %803 = vmatmul.mubr.f32.gmra.mrb[0].mxu0 %v736
        %v804 = vpop.f32.mrb[0].mxu0
        %v805 = vadd.f32 0.0, %v804
        %v806 = vpop.f32.mrb[0].mxu0
        %807 = vdwg.mxu0
        %v809 = vsel %vm253, %v805, 0
        %811 = vmatprep.subr.mxu0 0.0
        %812 = vmatpush1.msra.mxu0 %v155
        %813 = vmatprep.subr.mxu0 0.0
        %814 = vmatpush1.msra.mxu0 %v156
        %815 = vmatprep.subr.mxu0 0.0
        %816 = vmatpush1.msra.mxu0 %v157
        %817 = vmatprep.subr.mxu0 0.0
        %818 = vmatpush1.msra.mxu0 %v158
        %819 = vmatprep.subr.mxu0 0.0
        %820 = vmatpush1.msra.mxu0 0.0
        %821 = vmatprep.subr.mxu0 0.0
        %822 = vmatpush1.msra.mxu0 0.0
        %823 = vmatprep.subr.mxu0 0.0
        %824 = vmatpush1.msra.mxu0 0.0
        %825 = vmatprep.subr.mxu0 0.0
        %826 = vmatpush1.msra.mxu0 0.0
        %827 = vmatprep.subr.mxu0 0.0
        %828 = vmatpush1.msra.mxu0 0.0
        %829 = vmatprep.subr.mxu0 0.0
        %830 = vmatpush1.msra.mxu0 0.0
        %831 = vmatprep.subr.mxu0 0.0
        %832 = vmatpush1.msra.mxu0 0.0
        %833 = vmatprep.subr.mxu0 0.0
        %834 = vmatpush1.msra.mxu0 0.0
        %835 = vmatprep.subr.mxu0 0.0
        %836 = vmatpush1.msra.mxu0 0.0
        %837 = vmatprep.subr.mxu0 0.0
        %838 = vmatpush1.msra.mxu0 0.0
        %839 = vmatprep.subr.mxu0 0.0
        %840 = vmatpush1.msra.mxu0 0.0
        %841 = vmatprep.subr.mxu0 0.0
        %842 = vmatpush1.msra.mxu0 0.0
        %843 = vmatprep.subr.mxu0 0.0
        %844 = vmatpush1.msra.mxu0 0.0
        %845 = vmatprep.subr.mxu0 0.0
        %846 = vmatpush1.msra.mxu0 0.0
        %847 = vmatprep.subr.mxu0 0.0
        %848 = vmatpush1.msra.mxu0 0.0
        %849 = vmatprep.subr.mxu0 0.0
        %850 = vmatpush1.msra.mxu0 0.0
        %851 = vmatprep.subr.mxu0 0.0
        %852 = vmatpush1.msra.mxu0 0.0
        %853 = vmatprep.subr.mxu0 0.0
        %854 = vmatpush1.msra.mxu0 0.0
        %855 = vmatprep.subr.mxu0 0.0
        %856 = vmatpush1.msra.mxu0 0.0
        %857 = vmatprep.subr.mxu0 0.0
        %858 = vmatpush1.msra.mxu0 0.0
        %859 = vmatprep.subr.mxu0 0.0
        %860 = vmatpush1.msra.mxu0 0.0
        %861 = vmatprep.subr.mxu0 0.0
        %862 = vmatpush1.msra.mxu0 0.0
        %863 = vmatprep.subr.mxu0 0.0
        %864 = vmatpush1.msra.mxu0 0.0
        %865 = vmatprep.subr.mxu0 0.0
        %866 = vmatpush1.msra.mxu0 0.0
        %867 = vmatprep.subr.mxu0 0.0
        %868 = vmatpush1.msra.mxu0 0.0
        %869 = vmatprep.subr.mxu0 0.0
        %870 = vmatpush1.msra.mxu0 0.0
        %871 = vmatprep.subr.mxu0 0.0
        %872 = vmatpush1.msra.mxu0 0.0
        %873 = vmatprep.subr.mxu0 0.0
        %874 = vmatpush1.msra.mxu0 0.0
        %875 = vmatprep.mubr.f32.mxu0 0.0
        %876 = vmatmul.mubr.f32.gmra.mrb[0].mxu0 %v809
        %v877 = vpop.f32.mrb[0].mxu0
        %v878 = vadd.f32 0.0, %v877
        %v879 = vpop.f32.mrb[0].mxu0
        %880 = vdwg.mxu0
        %882 = vrot.lane.b32.xlu0 %v878, 127
        %v883 = vpop.permute.xlu0 %882
        %885 = vxpose.xlu0.b32.start [1/16] %v883, 128
        %886 = vxpose.xlu0.b32.cont [2/16] 0.0, 128
        %887 = vxpose.xlu0.b32.cont [3/16] 0.0, 128
        %888 = vxpose.xlu0.b32.cont [4/16] 0.0, 128
        %889 = vxpose.xlu0.b32.cont [5/16] 0.0, 128
        %890 = vxpose.xlu0.b32.cont [6/16] 0.0, 128
        %891 = vxpose.xlu0.b32.cont [7/16] 0.0, 128
        %892 = vxpose.xlu0.b32.cont [8/16] 0.0, 128
        %893 = vxpose.xlu0.b32.cont [9/16] 0.0, 128
        %894 = vxpose.xlu0.b32.cont [10/16] 0.0, 128
        %895 = vxpose.xlu0.b32.cont [11/16] 0.0, 128
        %896 = vxpose.xlu0.b32.cont [12/16] 0.0, 128
        %897 = vxpose.xlu0.b32.cont [13/16] 0.0, 128
        %898 = vxpose.xlu0.b32.cont [14/16] 0.0, 128
        %899 = vxpose.xlu0.b32.cont [15/16] 0.0, 128
        %900 = vxpose.xlu0.b32.end [16/16] 0.0, 128
        %v901 = vpop.trf.xlu0
        %v902 = vpop.trf.xlu0
        %v903 = vpop.trf.xlu0
        %v904 = vpop.trf.xlu0
        %v905 = vpop.trf.xlu0
        %v906 = vpop.trf.xlu0
        %v907 = vpop.trf.xlu0
        %v908 = vpop.trf.xlu0
        %v909 = vpop.trf.xlu0
        %v910 = vpop.trf.xlu0
        %v911 = vpop.trf.xlu0
        %v912 = vpop.trf.xlu0
        %v913 = vpop.trf.xlu0
        %v914 = vpop.trf.xlu0
        %v915 = vpop.trf.xlu0
        %v916 = vpop.trf.xlu0
        %917 = vset.pattern.permute.xlu0 0
        %918 = vperm.xlu0 %917, %v878
        %v919 = vpop.permute.xlu0 %918
        %v921 = vlaneseq
        %v922 = vshrl.u32 %v921, 7
        %v923 = vsub.s32 0, %v922
        %v924 = vrot.slane %v901, %v923
        %v925 = vadd.f32 %v919, %v924
        %vm926 = vcmp.ge.f32.partialorder %v925, 0.0
        %v927 = vmul.f32 %v925, 0.2
        %v928 = vsel %vm926, %v925, %v927
        %930 = vrot.lane.b32.xlu0 %v928, 16
        %v931 = vpop.permute.xlu0 %930
        %v933 = vsel %vm140, 1.0, %v931
        %vm934 = vcmask 195712
        %v935 = vsel %vm934, %v933, -inf
        %936 = vmax.xlane.f32.xlu0 %v935
        %v937 = vpop.xlane.xlu0 %936
        %v938 = vsub.f32 %v933, %v937
        %v939 = vmul.f32 %v938, 1.442695
        %v940 = vpow.pop %v939
        %942 = vrot.lane.b32.xlu0 %v940, 112
        %v943 = vpop.permute.xlu0 %942
        %vm945 = vcmask 64512
        %v946 = vsel %vm945, %v943, 0.0
        %947 = vadd.xlane.f32.xlu0 %v946
        %v948 = vpop.xlane.xlu0 %947
        %v949 = vrcp.pop %v948
        %v950 = vmul.f32 %v940, %v949
        %952 = vrot.lane.b32.xlu0 %v950, 112
        %v953 = vpop.permute.xlu0 %952
        %v954 = vsel %vm945, %v953, 0
        %956 = vmatprep.subr.mxu0 0.0
        %957 = vmatpush1.msra.mxu0 %v805
        %958 = vmatprep.subr.mxu0 0.0
        %959 = vmatpush1.msra.mxu0 0.0
        %960 = vmatprep.subr.mxu0 0.0
        %961 = vmatpush1.msra.mxu0 0.0
        %962 = vmatprep.subr.mxu0 0.0
        %963 = vmatpush1.msra.mxu0 0.0
        %964 = vmatprep.subr.mxu0 0.0
        %965 = vmatpush1.msra.mxu0 0.0
        %966 = vmatprep.subr.mxu0 0.0
        %967 = vmatpush1.msra.mxu0 0.0
        %968 = vmatprep.subr.mxu0 0.0
        %969 = vmatpush1.msra.mxu0 0.0
        %970 = vmatprep.subr.mxu0 0.0
        %971 = vmatpush1.msra.mxu0 0.0
        %972 = vmatprep.subr.mxu0 0.0
        %973 = vmatpush1.msra.mxu0 0.0
        %974 = vmatprep.subr.mxu0 0.0
        %975 = vmatpush1.msra.mxu0 0.0
        %976 = vmatprep.subr.mxu0 0.0
        %977 = vmatpush1.msra.mxu0 0.0
        %978 = vmatprep.subr.mxu0 0.0
        %979 = vmatpush1.msra.mxu0 0.0
        %980 = vmatprep.subr.mxu0 0.0
        %981 = vmatpush1.msra.mxu0 0.0
        %982 = vmatprep.subr.mxu0 0.0
        %983 = vmatpush1.msra.mxu0 0.0
        %984 = vmatprep.subr.mxu0 0.0
        %985 = vmatpush1.msra.mxu0 0.0
        %986 = vmatprep.subr.mxu0 0.0
        %987 = vmatpush1.msra.mxu0 0.0
        %988 = vmatprep.subr.mxu0 0.0
        %989 = vmatpush1.msra.mxu0 0.0
        %990 = vmatprep.subr.mxu0 0.0
        %991 = vmatpush1.msra.mxu0 0.0
        %992 = vmatprep.subr.mxu0 0.0
        %993 = vmatpush1.msra.mxu0 0.0
        %994 = vmatprep.subr.mxu0 0.0
        %995 = vmatpush1.msra.mxu0 0.0
        %996 = vmatprep.subr.mxu0 0.0
        %997 = vmatpush1.msra.mxu0 0.0
        %998 = vmatprep.subr.mxu0 0.0
        %999 = vmatpush1.msra.mxu0 0.0
        %1000 = vmatprep.subr.mxu0 0.0
        %1001 = vmatpush1.msra.mxu0 0.0
        %1002 = vmatprep.subr.mxu0 0.0
        %1003 = vmatpush1.msra.mxu0 0.0
        %1004 = vmatprep.subr.mxu0 0.0
        %1005 = vmatpush1.msra.mxu0 0.0
        %1006 = vmatprep.subr.mxu0 0.0
        %1007 = vmatpush1.msra.mxu0 0.0
        %1008 = vmatprep.subr.mxu0 0.0
        %1009 = vmatpush1.msra.mxu0 0.0
        %1010 = vmatprep.subr.mxu0 0.0
        %1011 = vmatpush1.msra.mxu0 0.0
        %1012 = vmatprep.subr.mxu0 0.0
        %1013 = vmatpush1.msra.mxu0 0.0
        %1014 = vmatprep.subr.mxu0 0.0
        %1015 = vmatpush1.msra.mxu0 0.0
        %1016 = vmatprep.subr.mxu0 0.0
        %1017 = vmatpush1.msra.mxu0 0.0
        %1018 = vmatprep.subr.mxu0 0.0
        %1019 = vmatpush1.msra.mxu0 0.0
        %1020 = vmatprep.mubr.f32.mxu0 0.0
        %1021 = vmatmul.mubr.f32.gmra.mrb[0].mxu0 %v954
        %v1022 = vpop.f32.mrb[0].mxu0
        %v1023 = vadd.f32 0.0, %v1022
        %v1024 = vpop.f32.mrb[0].mxu0
        %1025 = vdwg.mxu0
        %v1026 = vlaneseq
        %v1027 = vshrl.u32 %v1026, 7
        %v1028 = vsub.s32 0, %v1027
        %v1029 = vrot.slane %v163, %v1028
        %v1031 = vsel %vm253, %v1023, 0
        %1033 = vmatprep.subr.mxu0 0.0
        %1034 = vmatpush1.msra.mxu0 %v159
        %1035 = vmatprep.subr.mxu0 0.0
        %1036 = vmatpush1.msra.mxu0 %v160
        %1037 = vmatprep.subr.mxu0 0.0
        %1038 = vmatpush1.msra.mxu0 %v161
        %1039 = vmatprep.subr.mxu0 0.0
        %1040 = vmatpush1.msra.mxu0 %v162
        %1041 = vmatprep.subr.mxu0 0.0
        %1042 = vmatpush1.msra.mxu0 0.0
        %1043 = vmatprep.subr.mxu0 0.0
        %1044 = vmatpush1.msra.mxu0 0.0
        %1045 = vmatprep.subr.mxu0 0.0
        %1046 = vmatpush1.msra.mxu0 0.0
        %1047 = vmatprep.subr.mxu0 0.0
        %1048 = vmatpush1.msra.mxu0 0.0
        %1049 = vmatprep.subr.mxu0 0.0
        %1050 = vmatpush1.msra.mxu0 0.0
        %1051 = vmatprep.subr.mxu0 0.0
        %1052 = vmatpush1.msra.mxu0 0.0
        %1053 = vmatprep.subr.mxu0 0.0
        %1054 = vmatpush1.msra.mxu0 0.0
        %1055 = vmatprep.subr.mxu0 0.0
        %1056 = vmatpush1.msra.mxu0 0.0
        %1057 = vmatprep.subr.mxu0 0.0
        %1058 = vmatpush1.msra.mxu0 0.0
        %1059 = vmatprep.subr.mxu0 0.0
        %1060 = vmatpush1.msra.mxu0 0.0
        %1061 = vmatprep.subr.mxu0 0.0
        %1062 = vmatpush1.msra.mxu0 0.0
        %1063 = vmatprep.subr.mxu0 0.0
        %1064 = vmatpush1.msra.mxu0 0.0
        %1065 = vmatprep.subr.mxu0 0.0
        %1066 = vmatpush1.msra.mxu0 0.0
        %1067 = vmatprep.subr.mxu0 0.0
        %1068 = vmatpush1.msra.mxu0 0.0
        %1069 = vmatprep.subr.mxu0 0.0
        %1070 = vmatpush1.msra.mxu0 0.0
        %1071 = vmatprep.subr.mxu0 0.0
        %1072 = vmatpush1.msra.mxu0 0.0
        %1073 = vmatprep.subr.mxu0 0.0
        %1074 = vmatpush1.msra.mxu0 0.0
        %1075 = vmatprep.subr.mxu0 0.0
        %1076 = vmatpush1.msra.mxu0 0.0
        %1077 = vmatprep.subr.mxu0 0.0
        %1078 = vmatpush1.msra.mxu0 0.0
        %1079 = vmatprep.subr.mxu0 0.0
        %1080 = vmatpush1.msra.mxu0 0.0
        %1081 = vmatprep.subr.mxu0 0.0
        %1082 = vmatpush1.msra.mxu0 0.0
        %1083 = vmatprep.subr.mxu0 0.0
        %1084 = vmatpush1.msra.mxu0 0.0
        %1085 = vmatprep.subr.mxu0 0.0
        %1086 = vmatpush1.msra.mxu0 0.0
        %1087 = vmatprep.subr.mxu0 0.0
        %1088 = vmatpush1.msra.mxu0 0.0
        %1089 = vmatprep.subr.mxu0 0.0
        %1090 = vmatpush1.msra.mxu0 0.0
        %1091 = vmatprep.subr.mxu0 0.0
        %1092 = vmatpush1.msra.mxu0 0.0
        %1093 = vmatprep.subr.mxu0 0.0
        %1094 = vmatpush1.msra.mxu0 0.0
        %1095 = vmatprep.subr.mxu0 0.0
        %1096 = vmatpush1.msra.mxu0 0.0
        %1097 = vmatprep.mubr.f32.mxu0 0.0
        %1098 = vmatmul.mubr.f32.gmra.mrb[0].mxu0 %v1031
        %v1099 = vpop.f32.mrb[0].mxu0
        %v1100 = vadd.f32 %v1029, %v1099
        %v1101 = vpop.f32.mrb[0].mxu0
        %1102 = vdwg.mxu0
        %v1103 = vmax.f32 %v1100, 0.0
        %v1104 = vlaneseq
        %v1105 = vshrl.u32 %v1104, 7
        %v1106 = vsub.s32 0, %v1105
        %v1107 = vrot.slane %v168, %v1106
        %v1109 = vsel %vm253, %v1103, 0
        %1111 = vmatprep.subr.mxu0 0.0
        %1112 = vmatpush1.msra.mxu0 %v164
        %1113 = vmatprep.subr.mxu0 0.0
        %1114 = vmatpush1.msra.mxu0 %v165
        %1115 = vmatprep.subr.mxu0 0.0
        %1116 = vmatpush1.msra.mxu0 %v166
        %1117 = vmatprep.subr.mxu0 0.0
        %1118 = vmatpush1.msra.mxu0 %v167
        %1119 = vmatprep.subr.mxu0 0.0
        %1120 = vmatpush1.msra.mxu0 0.0
        %1121 = vmatprep.subr.mxu0 0.0
        %1122 = vmatpush1.msra.mxu0 0.0
        %1123 = vmatprep.subr.mxu0 0.0
        %1124 = vmatpush1.msra.mxu0 0.0
        %1125 = vmatprep.subr.mxu0 0.0
        %1126 = vmatpush1.msra.mxu0 0.0
        %1127 = vmatprep.subr.mxu0 0.0
        %1128 = vmatpush1.msra.mxu0 0.0
        %1129 = vmatprep.subr.mxu0 0.0
        %1130 = vmatpush1.msra.mxu0 0.0
        %1131 = vmatprep.subr.mxu0 0.0
        %1132 = vmatpush1.msra.mxu0 0.0
        %1133 = vmatprep.subr.mxu0 0.0
        %1134 = vmatpush1.msra.mxu0 0.0
        %1135 = vmatprep.subr.mxu0 0.0
        %1136 = vmatpush1.msra.mxu0 0.0
        %1137 = vmatprep.subr.mxu0 0.0
        %1138 = vmatpush1.msra.mxu0 0.0
        %1139 = vmatprep.subr.mxu0 0.0
        %1140 = vmatpush1.msra.mxu0 0.0
        %1141 = vmatprep.subr.mxu0 0.0
        %1142 = vmatpush1.msra.mxu0 0.0
        %1143 = vmatprep.subr.mxu0 0.0
        %1144 = vmatpush1.msra.mxu0 0.0
        %1145 = vmatprep.subr.mxu0 0.0
        %1146 = vmatpush1.msra.mxu0 0.0
        %1147 = vmatprep.subr.mxu0 0.0
        %1148 = vmatpush1.msra.mxu0 0.0
        %1149 = vmatprep.subr.mxu0 0.0
        %1150 = vmatpush1.msra.mxu0 0.0
        %1151 = vmatprep.subr.mxu0 0.0
        %1152 = vmatpush1.msra.mxu0 0.0
        %1153 = vmatprep.subr.mxu0 0.0
        %1154 = vmatpush1.msra.mxu0 0.0
        %1155 = vmatprep.subr.mxu0 0.0
        %1156 = vmatpush1.msra.mxu0 0.0
        %1157 = vmatprep.subr.mxu0 0.0
        %1158 = vmatpush1.msra.mxu0 0.0
        %1159 = vmatprep.subr.mxu0 0.0
        %1160 = vmatpush1.msra.mxu0 0.0
        %1161 = vmatprep.subr.mxu0 0.0
        %1162 = vmatpush1.msra.mxu0 0.0
        %1163 = vmatprep.subr.mxu0 0.0
        %1164 = vmatpush1.msra.mxu0 0.0
        %1165 = vmatprep.subr.mxu0 0.0
        %1166 = vmatpush1.msra.mxu0 0.0
        %1167 = vmatprep.subr.mxu0 0.0
        %1168 = vmatpush1.msra.mxu0 0.0
        %1169 = vmatprep.subr.mxu0 0.0
        %1170 = vmatpush1.msra.mxu0 0.0
        %1171 = vmatprep.subr.mxu0 0.0
        %1172 = vmatpush1.msra.mxu0 0.0
        %1173 = vmatprep.subr.mxu0 0.0
        %1174 = vmatpush1.msra.mxu0 0.0
        %1175 = vmatprep.mubr.f32.mxu0 0.0
        %1176 = vmatmul.mubr.f32.gmra.mrb[0].mxu0 %v1109
        %v1177 = vpop.f32.mrb[0].mxu0
        %v1178 = vadd.f32 %v1107, %v1177
        %v1179 = vpop.f32.mrb[0].mxu0
        %1180 = vdwg.mxu0
        %v1181 = vsel %vm253, %v1178, -inf
        %v1182 = vrot.slane %v1181, 4
        %v1183 = vmax.f32 %v1181, %v1182
        %v1184 = vrot.slane %v1183, 2
        %v1185 = vmax.f32 %v1183, %v1184
        %v1186 = vrot.slane %v1185, 1
        %v1187 = vmax.f32 %v1185, %v1186
        %v1188 = vsub.f32 %v1178, %v1187
        %v1189 = vmul.f32 %v1188, 1.442695
        %v1190 = vpow.pop %v1189
        %v1191 = vsel %vm253, %v1190, 0.0
        %v1192 = vrot.slane %v1191, 4
        %v1193 = vadd.f32 %v1191, %v1192
        %v1194 = vrot.slane %v1193, 2
        %v1195 = vadd.f32 %v1193, %v1194
        %v1196 = vrot.slane %v1195, 1
        %v1197 = vadd.f32 %v1195, %v1196
        %v1198 = vrcp.pop %v1197
        %v1199 = vmul.f32 %v1190, %v1198
        %1200 = vst.msk [vmem:[%s134] sm:$0xff] %vm253, %v1199
        %s1201 = sand.u32 %s71, 1
        %s1202 = scalar_lea.sflag [#allocation3], %s1201
        %s1203 = sand.u32 %s71, 1
        %s1204 = smul.addr %s1203, 8
        %s1205 = scalar_lea.vmem [#allocation2], %s1204
        // Predicated region
        $region29: #{tpu_custom_call.1} parent=27 // pred_check
          %p1206 = pneg %p81
        $region30: #{tpu_custom_call.1} parent=27 // pred_check_branch
          %1208 = sbr.rel (%p1206) target = $region32
        $region31: #{tpu_custom_call.1} parent=27 // pred_region
          %s1210 = ssub.s32 128, 128
          %1211 = vsyncadd %s1202, %s1210
          %s1212 = smul.addr %s16, 128
          %s1213 = scalar_lea.hbm %s2, %s1212
          %s1215 = sshll.u32 %s1205, 4
          %s1216 = int_to_ptr.vmem [resolvable:$true] %s1215
          %1218 = dma.vmem_to_hbm [thread:$0]  %s1216, 128, %s1213, %s1202
        $region32: #{tpu_custom_call.1} parent=27 // pred_fallthru
          _
      $region28: #{tpu_custom_call.1} parent=5 // pred_fallthru
        _
      %p1219 = scmp.le.s32.totalorder 2, %s11
      // Predicated region
      $region33: #{tpu_custom_call.1} parent=5 // pred_check
        %p1220 = pneg %p1219
      $region34: #{tpu_custom_call.1} parent=5 // pred_check_branch
        %1222 = sbr.rel (%p1220) target = $region36
      $region35: #{tpu_custom_call.1} parent=5 // pred_region
        %s1223 = ssub.s32 %s11, 2
        // Predicated region
        $region37: #{tpu_custom_call.1} parent=35 // pred_check
          %p1224 = pneg %p87
        $region38: #{tpu_custom_call.1} parent=35 // pred_check_branch
          %1226 = sbr.rel (%p1224) target = $region40
        $region39: #{tpu_custom_call.1} parent=35 // pred_region
          %s1227 = sand.u32 %s72, 1
          %s1228 = scalar_lea.sflag [#allocation3], %s1227
          %s1229 = sand.u32 %s72, 1
          %s1230 = smul.addr %s1229, 8
          %s1231 = scalar_lea.vmem [#allocation2], %s1230
          %1232 = dma.done %s1228, 128
        $region40: #{tpu_custom_call.1} parent=35 // pred_fallthru
          _
      $region36: #{tpu_custom_call.1} parent=5 // pred_fallthru
        _
    $region6: #{tpu_custom_call.1} parent=1 // loop_footer
      %s15 = sadd.s32 1, %s11
    $region7: #{tpu_custom_call.1} parent=1 // loop_footer_branch
      %10 = sbr.rel target = $region3
    $region8: #{tpu_custom_call.1} parent=1 // loop_exit
      _
    %1233 = vsyncpa [#allocation3], 1
    %s1234 = scalar_lea.sflag [#allocation3], 1
    %1235 = vsyncpa %s1234, 1

</llo_original>
